<compile_context>
chip_gen: v5e
topology: v5e:2x2
jax: 0.10.0
libtpu: 0.0.40
codegen_flags: <defaults>
</compile_context>

<pallas_src>
import functools

import jax
import jax.numpy as jnp
from jax.experimental import pallas as pl
from jax.experimental.pallas import tpu as pltpu

HIDDEN = 128
LANE = 128
SUBLANE = 8
MAX_TILE_B = 2048


def _cdiv(a, b):
    return -(-a // b)


def _round_up(x, m):
    return _cdiv(x, m) * m


def _mlp_kernel(x_ref, w1_ref, b1_ref, w2_ref, b2_ref, w3t_ref, b3_ref, o_ref):
    """Fused 3-layer MLP on one (tile_b, in_dim) batch tile.

    All operands and accumulation are f32 (HIGHEST matmul precision); the
    kernel is memory-bound so the MXU has huge slack. The last layer is
    computed transposed (contract the hidden dim of both operands) so the
    per-row outputs pack along the 128-lane axis and the store is lane-dense.
    """
    hp = jax.lax.Precision.HIGHEST

    # Hoist bias loads once per tile (JAX does not CSE broadcast_in_dim).
    b1 = b1_ref[...]
    b2 = b2_ref[...]
    b3 = b3_ref[...]

    x = x_ref[...]                                             # (tile_b, in_dim) f32
    h1 = jnp.dot(x, w1_ref[...], precision=hp,
                 preferred_element_type=jnp.float32) + b1
    h1 = jnp.maximum(h1, 0.0)
    h2 = jnp.dot(h1, w2_ref[...], precision=hp,
                 preferred_element_type=jnp.float32) + b2
    h2 = jnp.maximum(h2, 0.0)
    # out_t[j, b] = sum_k w3t[j, k] * h2[b, k]   -> (out_dim, tile_b)
    out_t = jax.lax.dot_general(
        w3t_ref[...], h2, (((1,), (1,)), ((), ())),
        precision=hp, preferred_element_type=jnp.float32)
    o_ref[...] = (out_t + b3).astype(o_ref.dtype)              # lane-dense store


@functools.partial(jax.jit, static_argnames=("tile_b",))
def feedforward_critic(obs, params, *, tile_b=None):
    """Run the fused critic MLP as a single Pallas kernel.

    obs: (B, in_dim), any float dtype (cast to f32 like torch.tensor(..., float)).
    params: dict with w1 (in_dim,128), b1 (1,128), w2 (128,128), b2 (1,128),
            w3t (out_dim,128)  [PyTorch layer3.weight orientation],
            b3 (out_dim,1). All f32, prepared once outside this call.
    Returns (B, out_dim) f32.
    """
    w1, b1, w2, b2, w3t, b3 = (params[k] for k in ("w1", "b1", "w2", "b2", "w3t", "b3"))
    B, in_dim = obs.shape
    out_dim = w3t.shape[0]
    obs = obs.astype(jnp.float32)

    if tile_b is None:
        if B <= LANE:
            tile_b = B   # one block covering the whole (tiny) batch
        else:
            # Large tiles amortize the ~0.35 us/step pipeline overhead; cap at
            # 2048 rows and keep >=4 steps for large B so the "parallel" grid
            # axis shards across v7x's two TensorCores with decent balance.
            tile_b = min(MAX_TILE_B, max(LANE, _round_up(_cdiv(B, 4), LANE)))
    assert tile_b == B or tile_b % LANE == 0, (
        "tile_b must equal the batch size or be a multiple of 128")

    # Ragged last block is fine: padded reads, masked writes (no batch padding).
    grid = (_cdiv(B, tile_b),)

    def const_spec(arr):
        # Full tensor every step; constant index_map -> DMA'd once, resident.
        return pl.BlockSpec(arr.shape, lambda i: (0,) * arr.ndim)

    out_t = pl.pallas_call(
        _mlp_kernel,
        out_shape=jax.ShapeDtypeStruct((out_dim, B), jnp.float32),
        grid=grid,
        in_specs=[
            pl.BlockSpec((tile_b, in_dim), lambda i: (i, 0)),   # obs tile (unpadded)
            const_spec(w1), const_spec(b1),
            const_spec(w2), const_spec(b2),
            const_spec(w3t), const_spec(b3),
        ],
        out_specs=pl.BlockSpec((out_dim, tile_b), lambda i: (0, i)),
        compiler_params=pltpu.CompilerParams(
            dimension_semantics=("parallel",),
        ),
    )(obs, w1, b1, w2, b2, w3t, b3)

    # (out_dim, B) -> (B, out_dim); tiny (B*out_dim f32), negligible cost.
    return out_t.T


def init_params(key, in_dim, out_dim):
    """nn.Linear-style U(-1/sqrt(fan_in), 1/sqrt(fan_in)) init, already in the
    kernel layout (done once; the jitted per-call path only touches obs)."""
    def linear(key, fan_in, fan_out):
        kw, kb = jax.random.split(key)
        bound = 1.0 / jnp.sqrt(jnp.float32(fan_in))
        w = jax.random.uniform(kw, (fan_in, fan_out), jnp.float32, -bound, bound)
        b = jax.random.uniform(kb, (fan_out,), jnp.float32, -bound, bound)
        return w, b

    k1, k2, k3 = jax.random.split(key, 3)
    w1, b1 = linear(k1, in_dim, HIDDEN)
    w2, b2 = linear(k2, HIDDEN, HIDDEN)
    w3, b3 = linear(k3, HIDDEN, out_dim)
    return {
        "w1": w1, "b1": b1.reshape(1, HIDDEN),
        "w2": w2, "b2": b2.reshape(1, HIDDEN),
        "w3t": w3.T, "b3": b3.reshape(out_dim, 1),
    }


def reference(obs, params):
    hp = jax.lax.Precision.HIGHEST
    h1 = jnp.maximum(jnp.dot(obs, params["w1"], precision=hp) + params["b1"], 0.0)
    h2 = jnp.maximum(jnp.dot(h1, params["w2"], precision=hp) + params["b2"], 0.0)
    return jnp.dot(h2, params["w3t"].T, precision=hp) + params["b3"].T


if __name__ == "__main__":
    key = jax.random.PRNGKey(0)
    k_obs, k_params = jax.random.split(key)

    # 512 rows -> default tile_b=128, grid=(4,): pipelined and megacore-shardable.
    batch, in_dim, out_dim = 512, 32, 1   # critic: scalar value per observation
    obs = jax.random.normal(k_obs, (batch, in_dim), jnp.float32)
    params = init_params(k_params, in_dim, out_dim)

    out = jax.block_until_ready(feedforward_critic(obs, params))
    assert out.shape == (batch, out_dim)

    ref = reference(obs, params)
    max_err = float(jnp.max(jnp.abs(out - ref)))
    assert jnp.allclose(out, ref, atol=1e-3, rtol=1e-3), (
        f"mismatch vs reference (max abs err {max_err})")

    print("KERNEL_OK")
</pallas_src>

<mosaic_0001>
module attributes {stable_mosaic.version = 11 : i64} {
  func.func @_mlp_kernel(%arg0: i32, %arg1: memref<128x32xf32, #tpu.memory_space<vmem>>, %arg2: memref<32x128xf32, #tpu.memory_space<vmem>>, %arg3: memref<1x128xf32, #tpu.memory_space<vmem>>, %arg4: memref<128x128xf32, #tpu.memory_space<vmem>>, %arg5: memref<1x128xf32, #tpu.memory_space<vmem>>, %arg6: memref<1x128xf32, #tpu.memory_space<vmem>>, %arg7: memref<1x1xf32, #tpu.memory_space<vmem>>, %arg8: memref<1x128xf32, #tpu.memory_space<vmem>>) attributes {dimension_semantics = [#tpu.dimension_semantics<parallel>], iteration_bounds = array<i64: 4>, scalar_prefetch = 0 : i64, scratch_operands = 0 : i64, tpu.core_type = #tpu.core_type<tc>, window_params = [{transform_indices = @transform_0, window_bounds = array<i64: 128, 32>}, {pipeline_mode = #tpu.pipeline_mode<synchronous>, transform_indices = @transform_1, window_bounds = array<i64: 32, 128>}, {pipeline_mode = #tpu.pipeline_mode<synchronous>, transform_indices = @transform_2, window_bounds = array<i64: 1, 128>}, {pipeline_mode = #tpu.pipeline_mode<synchronous>, transform_indices = @transform_3, window_bounds = array<i64: 128, 128>}, {pipeline_mode = #tpu.pipeline_mode<synchronous>, transform_indices = @transform_4, window_bounds = array<i64: 1, 128>}, {pipeline_mode = #tpu.pipeline_mode<synchronous>, transform_indices = @transform_5, window_bounds = array<i64: 1, 128>}, {pipeline_mode = #tpu.pipeline_mode<synchronous>, transform_indices = @transform_6, window_bounds = array<i64: 1, 1>}, {transform_indices = @transform_7, window_bounds = array<i64: 1, 128>}]} {
    %c0 = arith.constant 0 : index
    %c0_0 = arith.constant 0 : index
    %0 = vector.load %arg3[%c0, %c0_0] : memref<1x128xf32, #tpu.memory_space<vmem>>, vector<1x128xf32>
    %c0_1 = arith.constant 0 : index
    %c0_2 = arith.constant 0 : index
    %1 = vector.load %arg5[%c0_1, %c0_2] : memref<1x128xf32, #tpu.memory_space<vmem>>, vector<1x128xf32>
    %c0_3 = arith.constant 0 : index
    %c0_4 = arith.constant 0 : index
    %2 = vector.load %arg7[%c0_3, %c0_4] : memref<1x1xf32, #tpu.memory_space<vmem>>, vector<1x1xf32>
    %c0_5 = arith.constant 0 : index
    %c0_6 = arith.constant 0 : index
    %3 = vector.load %arg1[%c0_5, %c0_6] : memref<128x32xf32, #tpu.memory_space<vmem>>, vector<128x32xf32>
    %c0_7 = arith.constant 0 : index
    %c0_8 = arith.constant 0 : index
    %4 = vector.load %arg2[%c0_7, %c0_8] : memref<32x128xf32, #tpu.memory_space<vmem>>, vector<32x128xf32>
    %cst = arith.constant dense<0.000000e+00> : vector<128x128xf32>
    %5 = tpu.matmul %3, %4, %cst {dimension_numbers = #tpu.dot_dimension_numbers<[1], [0], [0], [1], [0, 0, 1, 1], [], []>, precision = #tpu.contract_precision<fp32>} : vector<128x32xf32>, vector<32x128xf32>, vector<128x128xf32> -> vector<128x128xf32>
    %6 = vector.broadcast %0 : vector<1x128xf32> to vector<128x128xf32>
    %7 = arith.addf %5, %6 : vector<128x128xf32>
    %cst_9 = arith.constant 0.000000e+00 : f32
    %8 = vector.broadcast %cst_9 : f32 to vector<128x128xf32>
    %9 = arith.maximumf %7, %8 : vector<128x128xf32>
    %c0_10 = arith.constant 0 : index
    %c0_11 = arith.constant 0 : index
    %10 = vector.load %arg4[%c0_10, %c0_11] : memref<128x128xf32, #tpu.memory_space<vmem>>, vector<128x128xf32>
    %cst_12 = arith.constant dense<0.000000e+00> : vector<128x128xf32>
    %11 = tpu.matmul %9, %10, %cst_12 {dimension_numbers = #tpu.dot_dimension_numbers<[1], [0], [0], [1], [0, 0, 1, 1], [], []>, precision = #tpu.contract_precision<fp32>} : vector<128x128xf32>, vector<128x128xf32>, vector<128x128xf32> -> vector<128x128xf32>
    %12 = vector.broadcast %1 : vector<1x128xf32> to vector<128x128xf32>
    %13 = arith.addf %11, %12 : vector<128x128xf32>
    %cst_13 = arith.constant 0.000000e+00 : f32
    %14 = vector.broadcast %cst_13 : f32 to vector<128x128xf32>
    %15 = arith.maximumf %13, %14 : vector<128x128xf32>
    %c0_14 = arith.constant 0 : index
    %c0_15 = arith.constant 0 : index
    %16 = vector.load %arg6[%c0_14, %c0_15] : memref<1x128xf32, #tpu.memory_space<vmem>>, vector<1x128xf32>
    %cst_16 = arith.constant dense<0.000000e+00> : vector<1x128xf32>
    %17 = tpu.matmul %16, %15, %cst_16 {dimension_numbers = #tpu.dot_dimension_numbers<[1], [1], [0], [0], [0, 0, 1, 0], [], []>, precision = #tpu.contract_precision<fp32>} : vector<1x128xf32>, vector<128x128xf32>, vector<1x128xf32> -> vector<1x128xf32>
    %18 = vector.broadcast %2 : vector<1x1xf32> to vector<1x128xf32>
    %19 = arith.addf %17, %18 : vector<1x128xf32>
    %c0_17 = arith.constant 0 : index
    %c0_18 = arith.constant 0 : index
    %20 = vector.load %arg8[%c0_17, %c0_18] : memref<1x128xf32, #tpu.memory_space<vmem>>, vector<1x128xf32>
    tpu.vector_store %arg8[%c0_17, %c0_18], %19 {strides = array<i32>} : memref<1x128xf32, #tpu.memory_space<vmem>>, vector<1x128xf32>,
    return
  }
  func.func @transform_0(%arg0: i32) -> (i32, i32) {
    %c0_i32 = arith.constant 0 : i32
    %c0_i32_0 = arith.constant 0 : i32
    return %arg0, %c0_i32 : i32, i32
  }
  func.func @transform_1(%arg0: i32) -> (i32, i32) {
    %c0_i32 = arith.constant 0 : i32
    %c0_i32_0 = arith.constant 0 : i32
    %c0_i32_1 = arith.constant 0 : i32
    return %c0_i32, %c0_i32_0 : i32, i32
  }
  func.func @transform_2(%arg0: i32) -> (i32, i32) {
    %c0_i32 = arith.constant 0 : i32
    %c0_i32_0 = arith.constant 0 : i32
    %c0_i32_1 = arith.constant 0 : i32
    return %c0_i32, %c0_i32_0 : i32, i32
  }
  func.func @transform_3(%arg0: i32) -> (i32, i32) {
    %c0_i32 = arith.constant 0 : i32
    %c0_i32_0 = arith.constant 0 : i32
    %c0_i32_1 = arith.constant 0 : i32
    return %c0_i32, %c0_i32_0 : i32, i32
  }
  func.func @transform_4(%arg0: i32) -> (i32, i32) {
    %c0_i32 = arith.constant 0 : i32
    %c0_i32_0 = arith.constant 0 : i32
    %c0_i32_1 = arith.constant 0 : i32
    return %c0_i32, %c0_i32_0 : i32, i32
  }
  func.func @transform_5(%arg0: i32) -> (i32, i32) {
    %c0_i32 = arith.constant 0 : i32
    %c0_i32_0 = arith.constant 0 : i32
    %c0_i32_1 = arith.constant 0 : i32
    return %c0_i32, %c0_i32_0 : i32, i32
  }
  func.func @transform_6(%arg0: i32) -> (i32, i32) {
    %c0_i32 = arith.constant 0 : i32
    %c0_i32_0 = arith.constant 0 : i32
    %c0_i32_1 = arith.constant 0 : i32
    return %c0_i32, %c0_i32_0 : i32, i32
  }
  func.func @transform_7(%arg0: i32) -> (i32, i32) {
    %c0_i32 = arith.constant 0 : i32
    %c0_i32_0 = arith.constant 0 : i32
    return %c0_i32, %arg0 : i32, i32
  }
}

</mosaic_0001>

<llo_original>
// kernel: feedforward_critic.1
$region0: #{feedforward_critic.1}
  #allocation0 [shape = 'u32[]', space=smem, size = 0x4, offset = 0x4, fixed_abs, tag = 'smem constant byte address 0x4 - core index']
  #allocation1 [shape = 'u32[72,128]{1,0:T(1,128)}', space=vmem, size = 0x9000, scoped, tag = 'internal scratch']
  #allocation2 [shape = 'f32[1,1]{1,0:T(1,128)S(1)}', space=vmem, size = 0x200, scoped, tag = 'scoped memory for feedforward_critic.1']
  %s0 = inlined_call_operand.vmem [shape: f32[512,32], index: 0, kind: input, shape index: {}]
  %s1 = inlined_call_operand.vmem [shape: f32[32,128], index: 1, kind: input, shape index: {}]
  %s2 = inlined_call_operand.vmem [shape: f32[1,128], index: 2, kind: input, shape index: {}]
  %s3 = inlined_call_operand.vmem [shape: f32[128,128], index: 3, kind: input, shape index: {}]
  %s4 = inlined_call_operand.vmem [shape: f32[1,128], index: 4, kind: input, shape index: {}]
  %s5 = inlined_call_operand.vmem [shape: f32[1,128], index: 5, kind: input, shape index: {}]
  %s6 = inlined_call_operand.<no memory space> [shape: f32[1,1], index: 6, kind: input, shape index: {}]
  %s7 = inlined_call_operand.hbm [shape: f32[1,512], index: 7, kind: output, shape index: {}]
  %s8 = sld [smem:[#allocation0]]
  $region61: #{feedforward_critic.1} parent=0
    _
  %s10 = ssub.s32 1, %s8
  %s11 = scalar_select 0, %s10, %s8
  %v12 = vstv %s6
  %13 = vst [vmem:[#allocation2] sm:$0x1] %v12
  $region1: #{feedforward_critic.1} parent=0
    #allocation3 [shape = 'u8[1024]{0}', space=vmem, size = 0x400, scoped, tag = 'output window, operand 0']
    #allocation4 [shape = 's32[2]{0}', space=sflag, size = 0x8, scoped, tag = 'scoped memory for feedforward_critic.1']
    %14 = vsyncpa [#allocation4], 0
    %s15 = scalar_lea.sflag [#allocation4], 1
    %16 = vsyncpa %s15, 0
    loop: start=0, step=1, limit=6
    $region2: #{feedforward_critic.1} parent=1 // loop_pre_header
      _
    $region3: #{feedforward_critic.1} parent=1 // loop_header
      %s18 = sphi 0, %s22
      %p19 = scmp.ge.s32.totalorder %s18, 6
      %s28 = sphi 0, %s30
      %s31 = sphi 0, %s28
      %s32 = sphi 0, %s31
      %s48 = sphi 0, %s32
      %s52 = sphi 0, %s52
      %s54 = sphi 0, %s52
      %s55 = sphi 0, %s54
      %s69 = sphi 0, %s55
      %s73 = sphi 0, %s73
      %s75 = sphi 0, %s73
      %s76 = sphi 0, %s75
      %s90 = sphi 0, %s76
      %s94 = sphi 0, %s94
      %s96 = sphi 0, %s94
      %s97 = sphi 0, %s96
      %s111 = sphi 0, %s97
      %s115 = sphi 0, %s115
      %s117 = sphi 0, %s115
      %s118 = sphi 0, %s117
      %s132 = sphi 0, %s118
      %s136 = sphi 0, %s136
      %s138 = sphi 0, %s136
      %s139 = sphi 0, %s138
      %s153 = sphi 0, %s139
      %s157 = sphi 0, %s157
      %s159 = sphi 0, %s157
      %s160 = sphi 0, %s159
      %s174 = sphi 0, %s160
      %s180 = sphi 0, %s182
      %s183 = sphi 0, %s180
      %s184 = sphi 0, %s183
      %s200 = sphi 0, %s184
    $region4: #{feedforward_critic.1} parent=1 // loop_header_branch
      %21 = sbr.rel (%p19) target = $region8
    $region5: #{feedforward_critic.1} parent=1 // loop_body
      %s23 = ssub.s32 %s18, 1
      %s24 = ssub.s32 %s18, 2
      %s25 = sadd.s32 %s18, 1
      %s26 = ssub.s32 %s18, %s25
      %p27 = scmp.eq.s32.totalorder %s26, 0
      %s29 = sadd.s32 %s28, 1
      %s30 = scalar_select %p27, %s28, %s29
      %p33 = pneg %p27
      %p34 = scmp.eq.s32.totalorder %s18, 3
      %p35 = por %p33, %p34
      %p36 = scmp.ne.s32.totalorder %s28, %s31
      %p37 = scmp.eq.s32.totalorder %s18, 0
      %p38 = por %p36, %p37
      %p39 = scmp.ne.s32.totalorder %s28, %s31
      %p40 = scmp.eq.s32.totalorder %s23, 3
      %p41 = por %p39, %p40
      %p42 = scmp.ne.s32.totalorder %s31, %s32
      %p43 = scmp.eq.s32.totalorder %s23, 0
      %p44 = por %p42, %p43
      %p45 = scmp.ne.s32.totalorder %s31, %s32
      %p46 = scmp.eq.s32.totalorder %s24, 3
      %p47 = por %p45, %p46
      %p49 = scmp.ne.s32.totalorder %s32, %s48
      %p50 = scmp.eq.s32.totalorder %s24, 0
      %p51 = por %p49, %p50
      %s53 = sadd.s32 %s52, 1
      %p56 = scmp.eq.s32.totalorder %s18, 3
      %p57 = scmp.ne.s32.totalorder %s52, %s54
      %p58 = scmp.eq.s32.totalorder %s18, 0
      %p59 = por %p57, %p58
      %p60 = scmp.ne.s32.totalorder %s52, %s54
      %p61 = scmp.eq.s32.totalorder %s23, 3
      %p62 = por %p60, %p61
      %p63 = scmp.ne.s32.totalorder %s54, %s55
      %p64 = scmp.eq.s32.totalorder %s23, 0
      %p65 = por %p63, %p64
      %p66 = scmp.ne.s32.totalorder %s54, %s55
      %p67 = scmp.eq.s32.totalorder %s24, 3
      %p68 = por %p66, %p67
      %p70 = scmp.ne.s32.totalorder %s55, %s69
      %p71 = scmp.eq.s32.totalorder %s24, 0
      %p72 = por %p70, %p71
      %s74 = sadd.s32 %s73, 1
      %p77 = scmp.eq.s32.totalorder %s18, 3
      %p78 = scmp.ne.s32.totalorder %s73, %s75
      %p79 = scmp.eq.s32.totalorder %s18, 0
      %p80 = por %p78, %p79
      %p81 = scmp.ne.s32.totalorder %s73, %s75
      %p82 = scmp.eq.s32.totalorder %s23, 3
      %p83 = por %p81, %p82
      %p84 = scmp.ne.s32.totalorder %s75, %s76
      %p85 = scmp.eq.s32.totalorder %s23, 0
      %p86 = por %p84, %p85
      %p87 = scmp.ne.s32.totalorder %s75, %s76
      %p88 = scmp.eq.s32.totalorder %s24, 3
      %p89 = por %p87, %p88
      %p91 = scmp.ne.s32.totalorder %s76, %s90
      %p92 = scmp.eq.s32.totalorder %s24, 0
      %p93 = por %p91, %p92
      %s95 = sadd.s32 %s94, 1
      %p98 = scmp.eq.s32.totalorder %s18, 3
      %p99 = scmp.ne.s32.totalorder %s94, %s96
      %p100 = scmp.eq.s32.totalorder %s18, 0
      %p101 = por %p99, %p100
      %p102 = scmp.ne.s32.totalorder %s94, %s96
      %p103 = scmp.eq.s32.totalorder %s23, 3
      %p104 = por %p102, %p103
      %p105 = scmp.ne.s32.totalorder %s96, %s97
      %p106 = scmp.eq.s32.totalorder %s23, 0
      %p107 = por %p105, %p106
      %p108 = scmp.ne.s32.totalorder %s96, %s97
      %p109 = scmp.eq.s32.totalorder %s24, 3
      %p110 = por %p108, %p109
      %p112 = scmp.ne.s32.totalorder %s97, %s111
      %p113 = scmp.eq.s32.totalorder %s24, 0
      %p114 = por %p112, %p113
      %s116 = sadd.s32 %s115, 1
      %p119 = scmp.eq.s32.totalorder %s18, 3
      %p120 = scmp.ne.s32.totalorder %s115, %s117
      %p121 = scmp.eq.s32.totalorder %s18, 0
      %p122 = por %p120, %p121
      %p123 = scmp.ne.s32.totalorder %s115, %s117
      %p124 = scmp.eq.s32.totalorder %s23, 3
      %p125 = por %p123, %p124
      %p126 = scmp.ne.s32.totalorder %s117, %s118
      %p127 = scmp.eq.s32.totalorder %s23, 0
      %p128 = por %p126, %p127
      %p129 = scmp.ne.s32.totalorder %s117, %s118
      %p130 = scmp.eq.s32.totalorder %s24, 3
      %p131 = por %p129, %p130
      %p133 = scmp.ne.s32.totalorder %s118, %s132
      %p134 = scmp.eq.s32.totalorder %s24, 0
      %p135 = por %p133, %p134
      %s137 = sadd.s32 %s136, 1
      %p140 = scmp.eq.s32.totalorder %s18, 3
      %p141 = scmp.ne.s32.totalorder %s136, %s138
      %p142 = scmp.eq.s32.totalorder %s18, 0
      %p143 = por %p141, %p142
      %p144 = scmp.ne.s32.totalorder %s136, %s138
      %p145 = scmp.eq.s32.totalorder %s23, 3
      %p146 = por %p144, %p145
      %p147 = scmp.ne.s32.totalorder %s138, %s139
      %p148 = scmp.eq.s32.totalorder %s23, 0
      %p149 = por %p147, %p148
      %p150 = scmp.ne.s32.totalorder %s138, %s139
      %p151 = scmp.eq.s32.totalorder %s24, 3
      %p152 = por %p150, %p151
      %p154 = scmp.ne.s32.totalorder %s139, %s153
      %p155 = scmp.eq.s32.totalorder %s24, 0
      %p156 = por %p154, %p155
      %s158 = sadd.s32 %s157, 1
      %p161 = scmp.eq.s32.totalorder %s18, 3
      %p162 = scmp.ne.s32.totalorder %s157, %s159
      %p163 = scmp.eq.s32.totalorder %s18, 0
      %p164 = por %p162, %p163
      %p165 = scmp.ne.s32.totalorder %s157, %s159
      %p166 = scmp.eq.s32.totalorder %s23, 3
      %p167 = por %p165, %p166
      %p168 = scmp.ne.s32.totalorder %s159, %s160
      %p169 = scmp.eq.s32.totalorder %s23, 0
      %p170 = por %p168, %p169
      %p171 = scmp.ne.s32.totalorder %s159, %s160
      %p172 = scmp.eq.s32.totalorder %s24, 3
      %p173 = por %p171, %p172
      %p175 = scmp.ne.s32.totalorder %s160, %s174
      %p176 = scmp.eq.s32.totalorder %s24, 0
      %p177 = por %p175, %p176
      %s178 = ssub.s32 %s18, %s25
      %p179 = scmp.eq.s32.totalorder %s178, 0
      %s181 = sadd.s32 %s180, 1
      %s182 = scalar_select %p179, %s180, %s181
      %p185 = pneg %p179
      %p186 = scmp.eq.s32.totalorder %s18, 3
      %p187 = por %p185, %p186
      %p188 = scmp.ne.s32.totalorder %s180, %s183
      %p189 = scmp.eq.s32.totalorder %s18, 0
      %p190 = por %p188, %p189
      %p191 = scmp.ne.s32.totalorder %s180, %s183
      %p192 = scmp.eq.s32.totalorder %s23, 3
      %p193 = por %p191, %p192
      %p194 = scmp.ne.s32.totalorder %s183, %s184
      %p195 = scmp.eq.s32.totalorder %s23, 0
      %p196 = por %p194, %p195
      %p197 = scmp.ne.s32.totalorder %s183, %s184
      %p198 = scmp.eq.s32.totalorder %s24, 3
      %p199 = por %p197, %p198
      %p201 = scmp.ne.s32.totalorder %s184, %s200
      %p202 = scmp.eq.s32.totalorder %s24, 0
      %p203 = por %p201, %p202
      %p204 = scmp.le.s32.totalorder 1, %s18
      %p205 = scmp.lt.s32.totalorder %s18, 5
      %p206 = pnand %p204, %p205
      %p207 = pneg %p206
      // Predicated region
      $region9: #{feedforward_critic.1} parent=5 // pred_check
        _
      $region10: #{feedforward_critic.1} parent=5 // pred_check_branch
        %209 = sbr.rel (%p206) target = $region12
      $region11: #{feedforward_critic.1} parent=5 // pred_region
        %s210 = ssub.s32 %s18, 1
        // Predicated region
        $region13: #{feedforward_critic.1} parent=11 // pred_check
          %p211 = pneg %p65
        $region14: #{feedforward_critic.1} parent=11 // pred_check_branch
          %213 = sbr.rel (%p211) target = $region16
        $region15: #{feedforward_critic.1} parent=11 // pred_region
          _
        $region16: #{feedforward_critic.1} parent=11 // pred_fallthru
          _
        // Predicated region
        $region17: #{feedforward_critic.1} parent=11 // pred_check
          %p214 = pneg %p86
        $region18: #{feedforward_critic.1} parent=11 // pred_check_branch
          %216 = sbr.rel (%p214) target = $region20
        $region19: #{feedforward_critic.1} parent=11 // pred_region
          _
        $region20: #{feedforward_critic.1} parent=11 // pred_fallthru
          _
        // Predicated region
        $region21: #{feedforward_critic.1} parent=11 // pred_check
          %p217 = pneg %p107
        $region22: #{feedforward_critic.1} parent=11 // pred_check_branch
          %219 = sbr.rel (%p217) target = $region24
        $region23: #{feedforward_critic.1} parent=11 // pred_region
          _
        $region24: #{feedforward_critic.1} parent=11 // pred_fallthru
          _
        // Predicated region
        $region25: #{feedforward_critic.1} parent=11 // pred_check
          %p220 = pneg %p128
        $region26: #{feedforward_critic.1} parent=11 // pred_check_branch
          %222 = sbr.rel (%p220) target = $region28
        $region27: #{feedforward_critic.1} parent=11 // pred_region
          _
        $region28: #{feedforward_critic.1} parent=11 // pred_fallthru
          _
        // Predicated region
        $region29: #{feedforward_critic.1} parent=11 // pred_check
          %p223 = pneg %p149
        $region30: #{feedforward_critic.1} parent=11 // pred_check_branch
          %225 = sbr.rel (%p223) target = $region32
        $region31: #{feedforward_critic.1} parent=11 // pred_region
          _
        $region32: #{feedforward_critic.1} parent=11 // pred_fallthru
          _
        // Predicated region
        $region33: #{feedforward_critic.1} parent=11 // pred_check
          %p226 = pneg %p170
        $region34: #{feedforward_critic.1} parent=11 // pred_check_branch
          %228 = sbr.rel (%p226) target = $region36
        $region35: #{feedforward_critic.1} parent=11 // pred_region
          _
        $region36: #{feedforward_critic.1} parent=11 // pred_fallthru
          _
      $region12: #{feedforward_critic.1} parent=5 // pred_fallthru
        _
      %p229 = scmp.lt.s32.totalorder %s18, 4
      // Predicated region
      $region37: #{feedforward_critic.1} parent=5 // pred_check
        %p230 = pneg %p229
      $region38: #{feedforward_critic.1} parent=5 // pred_check_branch
        %232 = sbr.rel (%p230) target = $region40
      $region39: #{feedforward_critic.1} parent=5 // pred_region
        // Predicated region
        $region41: #{feedforward_critic.1} parent=39 // pred_check
          %p233 = pneg %p38
        $region42: #{feedforward_critic.1} parent=39 // pred_check_branch
          %235 = sbr.rel (%p233) target = $region44
        $region43: #{feedforward_critic.1} parent=39 // pred_region
          %s236 = smul.u32 16, %s18
          %p237 = scmp.lt.s32.totalorder %s236, 63
          %s238 = scalar_select %p237, %s236, 63
          %s239 = smul.addr %s238, 8
          %s240 = scalar_lea.vmem %s0, %s239
          %s241 = smul.u32 16, %s18
        $region44: #{feedforward_critic.1} parent=39 // pred_fallthru
          _
      $region40: #{feedforward_critic.1} parent=5 // pred_fallthru
        _
      %p242 = scmp.le.s32.totalorder 1, %s18
      %p243 = scmp.lt.s32.totalorder %s18, 5
      %p244 = pnand %p242, %p243
      %p245 = pneg %p244
      // Predicated region
      $region45: #{feedforward_critic.1} parent=5 // pred_check
        _
      $region46: #{feedforward_critic.1} parent=5 // pred_check_branch
        %247 = sbr.rel (%p244) target = $region48
      $region47: #{feedforward_critic.1} parent=5 // pred_region
        %s248 = ssub.s32 %s18, 1
        %s249 = smul.u32 16, %s23
        %p250 = scmp.lt.s32.totalorder %s249, 63
        %s251 = scalar_select %p250, %s249, 63
        %s252 = smul.addr %s251, 8
        %s253 = scalar_lea.vmem %s0, %s252
        %p254 = pneg %p44
        %p255 = pneg %p41
        %p256 = pneg %p65
        %p257 = pneg %p62
        %p258 = pneg %p86
        %p259 = pneg %p83
        %p260 = pneg %p107
        %p261 = pneg %p104
        %p262 = pneg %p128
        %p263 = pneg %p125
        %p264 = pneg %p149
        %p265 = pneg %p146
        %p266 = pneg %p170
        %p267 = pneg %p167
        %p268 = pneg %p196
        %p269 = pneg %p193
        %s270 = sand.u32 %s183, 1
        %s271 = scalar_lea.sflag [#allocation4], %s270
        %s272 = sand.u32 %s183, 1
        %s273 = scalar_lea.vmem [#allocation3], %s272
        %s274 = smul.u32 16, %s23
        %p275 = scmp.lt.s32.totalorder %s274, 63
        %s276 = scalar_select %p275, %s274, 63
        %s277 = smul.addr %s276, 8
        %s278 = scalar_lea.vmem %s0, %s277
        %s279 = smul.u32 16, %s23
        %v280 = vld [vmem:[%s2] sm:$0x1]
        %v281 = vld [vmem:[%s4] sm:$0x1]
        %v282 = vld [vmem:[#allocation2] sm:$0x1]
        %v283 = vld [vmem:[%s278] sm:$0xff]
        %v284 = vld [vmem:[%s278 + $0x8] sm:$0xff]
        %v285 = vld [vmem:[%s278 + $0x10] sm:$0xff]
        %v286 = vld [vmem:[%s278 + $0x18] sm:$0xff]
        %v287 = vld [vmem:[%s278 + $0x20] sm:$0xff]
        %v288 = vld [vmem:[%s278 + $0x28] sm:$0xff]
        %v289 = vld [vmem:[%s278 + $0x30] sm:$0xff]
        %v290 = vld [vmem:[%s278 + $0x38] sm:$0xff]
        %v291 = vld [vmem:[%s278 + $0x40] sm:$0xff]
        %v292 = vld [vmem:[%s278 + $0x48] sm:$0xff]
        %v293 = vld [vmem:[%s278 + $0x50] sm:$0xff]
        %v294 = vld [vmem:[%s278 + $0x58] sm:$0xff]
        %v295 = vld [vmem:[%s278 + $0x60] sm:$0xff]
        %v296 = vld [vmem:[%s278 + $0x68] sm:$0xff]
        %v297 = vld [vmem:[%s278 + $0x70] sm:$0xff]
        %v298 = vld [vmem:[%s278 + $0x78] sm:$0xff]
        %v299 = vld [vmem:[%s1] sm:$0xff]
        %v300 = vld [vmem:[%s1 + $0x8] sm:$0xff]
        %v301 = vld [vmem:[%s1 + $0x10] sm:$0xff]
        %v302 = vld [vmem:[%s1 + $0x18] sm:$0xff]
        %v304 = vperm.slane %v280, 0
        %vm306 = vcmask 261120
        %v308 = vsel %vm306, %v283, 0
        %v311 = vsel %vm306, %v284, 0
        %v314 = vsel %vm306, %v285, 0
        %v317 = vsel %vm306, %v286, 0
        %v320 = vsel %vm306, %v287, 0
        %v323 = vsel %vm306, %v288, 0
        %v326 = vsel %vm306, %v289, 0
        %v329 = vsel %vm306, %v290, 0
        %v332 = vsel %vm306, %v291, 0
        %v335 = vsel %vm306, %v292, 0
        %v338 = vsel %vm306, %v293, 0
        %v341 = vsel %vm306, %v294, 0
        %v344 = vsel %vm306, %v295, 0
        %v347 = vsel %vm306, %v296, 0
        %v350 = vsel %vm306, %v297, 0
        %v353 = vsel %vm306, %v298, 0
        %355 = vmatpush.msra.mxu0 0.0
        %356 = vmatpush.msra.mxu0 0.0
        %357 = vmatpush.msra.mxu0 0.0
        %358 = vmatpush.msra.mxu0 0.0
        %359 = vmatpush.msra.mxu0 0.0
        %360 = vmatpush.msra.mxu0 0.0
        %361 = vmatpush.msra.mxu0 0.0
        %362 = vmatpush.msra.mxu0 0.0
        %363 = vmatpush.msra.mxu0 0.0
        %364 = vmatpush.msra.mxu0 0.0
        %365 = vmatpush.msra.mxu0 0.0
        %366 = vmatpush.msra.mxu0 0.0
        %v367 = vand.u32 %v302, 4294901760
        %368 = vmatpush.msra.mxu0 %v367
        %v369 = vand.u32 %v301, 4294901760
        %370 = vmatpush.msra.mxu0 %v369
        %v371 = vand.u32 %v300, 4294901760
        %372 = vmatpush.msra.mxu0 %v371
        %v373 = vand.u32 %v299, 4294901760
        %374 = vmatpush.msra.mxu0 %v373
        %v375 = vand.u32 %v308, 4294901760
        %v376 = vsub.f32 %v308, %v375
        %v377 = vand.u32 %v376, 4294901760
        %v378 = vsub.f32 %v376, %v377
        %v379 = vand.u32 %v378, 4294901760
        %380 = vmatmul.f32.gmra.mxu0 %v379
        %v381 = vpop.f32.mrf.mxu0
        %v382 = vadd.f32 %v304, %v381
        %v383 = vand.u32 %v311, 4294901760
        %v384 = vsub.f32 %v311, %v383
        %v385 = vand.u32 %v384, 4294901760
        %v386 = vsub.f32 %v384, %v385
        %v387 = vand.u32 %v386, 4294901760
        %388 = vmatmul.f32.gmra.mxu0 %v387
        %v389 = vpop.f32.mrf.mxu0
        %v390 = vadd.f32 %v304, %v389
        %v391 = vand.u32 %v314, 4294901760
        %v392 = vsub.f32 %v314, %v391
        %v393 = vand.u32 %v392, 4294901760
        %v394 = vsub.f32 %v392, %v393
        %v395 = vand.u32 %v394, 4294901760
        %396 = vmatmul.f32.gmra.mxu0 %v395
        %v397 = vpop.f32.mrf.mxu0
        %v398 = vadd.f32 %v304, %v397
        %v399 = vand.u32 %v317, 4294901760
        %v400 = vsub.f32 %v317, %v399
        %v401 = vand.u32 %v400, 4294901760
        %v402 = vsub.f32 %v400, %v401
        %v403 = vand.u32 %v402, 4294901760
        %404 = vmatmul.f32.gmra.mxu0 %v403
        %v405 = vpop.f32.mrf.mxu0
        %v406 = vadd.f32 %v304, %v405
        %v407 = vand.u32 %v320, 4294901760
        %v408 = vsub.f32 %v320, %v407
        %v409 = vand.u32 %v408, 4294901760
        %v410 = vsub.f32 %v408, %v409
        %v411 = vand.u32 %v410, 4294901760
        %412 = vmatmul.f32.gmra.mxu0 %v411
        %v413 = vpop.f32.mrf.mxu0
        %v414 = vadd.f32 %v304, %v413
        %v415 = vand.u32 %v323, 4294901760
        %v416 = vsub.f32 %v323, %v415
        %v417 = vand.u32 %v416, 4294901760
        %v418 = vsub.f32 %v416, %v417
        %v419 = vand.u32 %v418, 4294901760
        %420 = vmatmul.f32.gmra.mxu0 %v419
        %v421 = vpop.f32.mrf.mxu0
        %v422 = vadd.f32 %v304, %v421
        %v423 = vand.u32 %v326, 4294901760
        %v424 = vsub.f32 %v326, %v423
        %v425 = vand.u32 %v424, 4294901760
        %v426 = vsub.f32 %v424, %v425
        %v427 = vand.u32 %v426, 4294901760
        %428 = vmatmul.f32.gmra.mxu0 %v427
        %v429 = vpop.f32.mrf.mxu0
        %v430 = vadd.f32 %v304, %v429
        %v431 = vand.u32 %v329, 4294901760
        %v432 = vsub.f32 %v329, %v431
        %v433 = vand.u32 %v432, 4294901760
        %v434 = vsub.f32 %v432, %v433
        %v435 = vand.u32 %v434, 4294901760
        %436 = vmatmul.f32.gmra.mxu0 %v435
        %v437 = vpop.f32.mrf.mxu0
        %v438 = vadd.f32 %v304, %v437
        %v439 = vand.u32 %v332, 4294901760
        %v440 = vsub.f32 %v332, %v439
        %v441 = vand.u32 %v440, 4294901760
        %v442 = vsub.f32 %v440, %v441
        %v443 = vand.u32 %v442, 4294901760
        %444 = vmatmul.f32.gmra.mxu0 %v443
        %v445 = vpop.f32.mrf.mxu0
        %v446 = vadd.f32 %v304, %v445
        %v447 = vand.u32 %v335, 4294901760
        %v448 = vsub.f32 %v335, %v447
        %v449 = vand.u32 %v448, 4294901760
        %v450 = vsub.f32 %v448, %v449
        %v451 = vand.u32 %v450, 4294901760
        %452 = vmatmul.f32.gmra.mxu0 %v451
        %v453 = vpop.f32.mrf.mxu0
        %v454 = vadd.f32 %v304, %v453
        %v455 = vand.u32 %v338, 4294901760
        %v456 = vsub.f32 %v338, %v455
        %v457 = vand.u32 %v456, 4294901760
        %v458 = vsub.f32 %v456, %v457
        %v459 = vand.u32 %v458, 4294901760
        %460 = vmatmul.f32.gmra.mxu0 %v459
        %v461 = vpop.f32.mrf.mxu0
        %v462 = vadd.f32 %v304, %v461
        %v463 = vand.u32 %v341, 4294901760
        %v464 = vsub.f32 %v341, %v463
        %v465 = vand.u32 %v464, 4294901760
        %v466 = vsub.f32 %v464, %v465
        %v467 = vand.u32 %v466, 4294901760
        %468 = vmatmul.f32.gmra.mxu0 %v467
        %v469 = vpop.f32.mrf.mxu0
        %v470 = vadd.f32 %v304, %v469
        %v471 = vand.u32 %v344, 4294901760
        %v472 = vsub.f32 %v344, %v471
        %v473 = vand.u32 %v472, 4294901760
        %v474 = vsub.f32 %v472, %v473
        %v475 = vand.u32 %v474, 4294901760
        %476 = vmatmul.f32.gmra.mxu0 %v475
        %v477 = vpop.f32.mrf.mxu0
        %v478 = vadd.f32 %v304, %v477
        %v479 = vand.u32 %v347, 4294901760
        %v480 = vsub.f32 %v347, %v479
        %v481 = vand.u32 %v480, 4294901760
        %v482 = vsub.f32 %v480, %v481
        %v483 = vand.u32 %v482, 4294901760
        %484 = vmatmul.f32.gmra.mxu0 %v483
        %v485 = vpop.f32.mrf.mxu0
        %v486 = vadd.f32 %v304, %v485
        %v487 = vand.u32 %v350, 4294901760
        %v488 = vsub.f32 %v350, %v487
        %v489 = vand.u32 %v488, 4294901760
        %v490 = vsub.f32 %v488, %v489
        %v491 = vand.u32 %v490, 4294901760
        %492 = vmatmul.f32.gmra.mxu0 %v491
        %v493 = vpop.f32.mrf.mxu0
        %v494 = vadd.f32 %v304, %v493
        %v495 = vand.u32 %v353, 4294901760
        %v496 = vsub.f32 %v353, %v495
        %v497 = vand.u32 %v496, 4294901760
        %v498 = vsub.f32 %v496, %v497
        %v499 = vand.u32 %v498, 4294901760
        %500 = vmatmul.f32.gmra.mxu0 %v499
        %v501 = vpop.f32.mrf.mxu0
        %v502 = vadd.f32 %v304, %v501
        %503 = vdwg.mxu0
        %504 = vmatpush.msra.mxu0 0.0
        %505 = vmatpush.msra.mxu0 0.0
        %506 = vmatpush.msra.mxu0 0.0
        %507 = vmatpush.msra.mxu0 0.0
        %508 = vmatpush.msra.mxu0 0.0
        %509 = vmatpush.msra.mxu0 0.0
        %510 = vmatpush.msra.mxu0 0.0
        %511 = vmatpush.msra.mxu0 0.0
        %512 = vmatpush.msra.mxu0 0.0
        %513 = vmatpush.msra.mxu0 0.0
        %514 = vmatpush.msra.mxu0 0.0
        %515 = vmatpush.msra.mxu0 0.0
        %v516 = vand.u32 %v302, 4294901760
        %v517 = vsub.f32 %v302, %v516
        %v518 = vand.u32 %v517, 4294901760
        %v519 = vsub.f32 %v517, %v518
        %v520 = vand.u32 %v519, 4294901760
        %521 = vmatpush.msra.mxu0 %v520
        %v522 = vand.u32 %v301, 4294901760
        %v523 = vsub.f32 %v301, %v522
        %v524 = vand.u32 %v523, 4294901760
        %v525 = vsub.f32 %v523, %v524
        %v526 = vand.u32 %v525, 4294901760
        %527 = vmatpush.msra.mxu0 %v526
        %v528 = vand.u32 %v300, 4294901760
        %v529 = vsub.f32 %v300, %v528
        %v530 = vand.u32 %v529, 4294901760
        %v531 = vsub.f32 %v529, %v530
        %v532 = vand.u32 %v531, 4294901760
        %533 = vmatpush.msra.mxu0 %v532
        %v534 = vand.u32 %v299, 4294901760
        %v535 = vsub.f32 %v299, %v534
        %v536 = vand.u32 %v535, 4294901760
        %v537 = vsub.f32 %v535, %v536
        %v538 = vand.u32 %v537, 4294901760
        %539 = vmatpush.msra.mxu0 %v538
        %v540 = vand.u32 %v308, 4294901760
        %541 = vmatmul.f32.gmra.mxu0 %v540
        %v542 = vpop.f32.mrf.mxu0
        %v543 = vadd.f32 %v382, %v542
        %v544 = vand.u32 %v311, 4294901760
        %545 = vmatmul.f32.gmra.mxu0 %v544
        %v546 = vpop.f32.mrf.mxu0
        %v547 = vadd.f32 %v390, %v546
        %v548 = vand.u32 %v314, 4294901760
        %549 = vmatmul.f32.gmra.mxu0 %v548
        %v550 = vpop.f32.mrf.mxu0
        %v551 = vadd.f32 %v398, %v550
        %v552 = vand.u32 %v317, 4294901760
        %553 = vmatmul.f32.gmra.mxu0 %v552
        %v554 = vpop.f32.mrf.mxu0
        %v555 = vadd.f32 %v406, %v554
        %v556 = vand.u32 %v320, 4294901760
        %557 = vmatmul.f32.gmra.mxu0 %v556
        %v558 = vpop.f32.mrf.mxu0
        %v559 = vadd.f32 %v414, %v558
        %v560 = vand.u32 %v323, 4294901760
        %561 = vmatmul.f32.gmra.mxu0 %v560
        %v562 = vpop.f32.mrf.mxu0
        %v563 = vadd.f32 %v422, %v562
        %v564 = vand.u32 %v326, 4294901760
        %565 = vmatmul.f32.gmra.mxu0 %v564
        %v566 = vpop.f32.mrf.mxu0
        %v567 = vadd.f32 %v430, %v566
        %v568 = vand.u32 %v329, 4294901760
        %569 = vmatmul.f32.gmra.mxu0 %v568
        %v570 = vpop.f32.mrf.mxu0
        %v571 = vadd.f32 %v438, %v570
        %v572 = vand.u32 %v332, 4294901760
        %573 = vmatmul.f32.gmra.mxu0 %v572
        %v574 = vpop.f32.mrf.mxu0
        %v575 = vadd.f32 %v446, %v574
        %v576 = vand.u32 %v335, 4294901760
        %577 = vmatmul.f32.gmra.mxu0 %v576
        %v578 = vpop.f32.mrf.mxu0
        %v579 = vadd.f32 %v454, %v578
        %v580 = vand.u32 %v338, 4294901760
        %581 = vmatmul.f32.gmra.mxu0 %v580
        %v582 = vpop.f32.mrf.mxu0
        %v583 = vadd.f32 %v462, %v582
        %v584 = vand.u32 %v341, 4294901760
        %585 = vmatmul.f32.gmra.mxu0 %v584
        %v586 = vpop.f32.mrf.mxu0
        %v587 = vadd.f32 %v470, %v586
        %v588 = vand.u32 %v344, 4294901760
        %589 = vmatmul.f32.gmra.mxu0 %v588
        %v590 = vpop.f32.mrf.mxu0
        %v591 = vadd.f32 %v478, %v590
        %v592 = vand.u32 %v347, 4294901760
        %593 = vmatmul.f32.gmra.mxu0 %v592
        %v594 = vpop.f32.mrf.mxu0
        %v595 = vadd.f32 %v486, %v594
        %v596 = vand.u32 %v350, 4294901760
        %597 = vmatmul.f32.gmra.mxu0 %v596
        %v598 = vpop.f32.mrf.mxu0
        %v599 = vadd.f32 %v494, %v598
        %v600 = vand.u32 %v353, 4294901760
        %601 = vmatmul.f32.gmra.mxu0 %v600
        %v602 = vpop.f32.mrf.mxu0
        %v603 = vadd.f32 %v502, %v602
        %604 = vdwg.mxu0
        %605 = vmatpush.msra.mxu0 0.0
        %606 = vmatpush.msra.mxu0 0.0
        %607 = vmatpush.msra.mxu0 0.0
        %608 = vmatpush.msra.mxu0 0.0
        %609 = vmatpush.msra.mxu0 0.0
        %610 = vmatpush.msra.mxu0 0.0
        %611 = vmatpush.msra.mxu0 0.0
        %612 = vmatpush.msra.mxu0 0.0
        %613 = vmatpush.msra.mxu0 0.0
        %614 = vmatpush.msra.mxu0 0.0
        %615 = vmatpush.msra.mxu0 0.0
        %616 = vmatpush.msra.mxu0 0.0
        %v617 = vand.u32 %v302, 4294901760
        %v618 = vsub.f32 %v302, %v617
        %619 = vmatpush.msra.mxu0 %v618
        %v620 = vand.u32 %v301, 4294901760
        %v621 = vsub.f32 %v301, %v620
        %622 = vmatpush.msra.mxu0 %v621
        %v623 = vand.u32 %v300, 4294901760
        %v624 = vsub.f32 %v300, %v623
        %625 = vmatpush.msra.mxu0 %v624
        %v626 = vand.u32 %v299, 4294901760
        %v627 = vsub.f32 %v299, %v626
        %628 = vmatpush.msra.mxu0 %v627
        %v629 = vand.u32 %v308, 4294901760
        %v630 = vsub.f32 %v308, %v629
        %631 = vmatmul.f32.gmra.mxu0 %v630
        %v632 = vpop.f32.mrf.mxu0
        %v633 = vadd.f32 %v543, %v632
        %v634 = vand.u32 %v311, 4294901760
        %v635 = vsub.f32 %v311, %v634
        %636 = vmatmul.f32.gmra.mxu0 %v635
        %v637 = vpop.f32.mrf.mxu0
        %v638 = vadd.f32 %v547, %v637
        %v639 = vand.u32 %v314, 4294901760
        %v640 = vsub.f32 %v314, %v639
        %641 = vmatmul.f32.gmra.mxu0 %v640
        %v642 = vpop.f32.mrf.mxu0
        %v643 = vadd.f32 %v551, %v642
        %v644 = vand.u32 %v317, 4294901760
        %v645 = vsub.f32 %v317, %v644
        %646 = vmatmul.f32.gmra.mxu0 %v645
        %v647 = vpop.f32.mrf.mxu0
        %v648 = vadd.f32 %v555, %v647
        %v649 = vand.u32 %v320, 4294901760
        %v650 = vsub.f32 %v320, %v649
        %651 = vmatmul.f32.gmra.mxu0 %v650
        %v652 = vpop.f32.mrf.mxu0
        %v653 = vadd.f32 %v559, %v652
        %v654 = vand.u32 %v323, 4294901760
        %v655 = vsub.f32 %v323, %v654
        %656 = vmatmul.f32.gmra.mxu0 %v655
        %v657 = vpop.f32.mrf.mxu0
        %v658 = vadd.f32 %v563, %v657
        %v659 = vand.u32 %v326, 4294901760
        %v660 = vsub.f32 %v326, %v659
        %661 = vmatmul.f32.gmra.mxu0 %v660
        %v662 = vpop.f32.mrf.mxu0
        %v663 = vadd.f32 %v567, %v662
        %v664 = vand.u32 %v329, 4294901760
        %v665 = vsub.f32 %v329, %v664
        %666 = vmatmul.f32.gmra.mxu0 %v665
        %v667 = vpop.f32.mrf.mxu0
        %v668 = vadd.f32 %v571, %v667
        %v669 = vand.u32 %v332, 4294901760
        %v670 = vsub.f32 %v332, %v669
        %671 = vmatmul.f32.gmra.mxu0 %v670
        %v672 = vpop.f32.mrf.mxu0
        %v673 = vadd.f32 %v575, %v672
        %v674 = vand.u32 %v335, 4294901760
        %v675 = vsub.f32 %v335, %v674
        %676 = vmatmul.f32.gmra.mxu0 %v675
        %v677 = vpop.f32.mrf.mxu0
        %v678 = vadd.f32 %v579, %v677
        %v679 = vand.u32 %v338, 4294901760
        %v680 = vsub.f32 %v338, %v679
        %681 = vmatmul.f32.gmra.mxu0 %v680
        %v682 = vpop.f32.mrf.mxu0
        %v683 = vadd.f32 %v583, %v682
        %v684 = vand.u32 %v341, 4294901760
        %v685 = vsub.f32 %v341, %v684
        %686 = vmatmul.f32.gmra.mxu0 %v685
        %v687 = vpop.f32.mrf.mxu0
        %v688 = vadd.f32 %v587, %v687
        %v689 = vand.u32 %v344, 4294901760
        %v690 = vsub.f32 %v344, %v689
        %691 = vmatmul.f32.gmra.mxu0 %v690
        %v692 = vpop.f32.mrf.mxu0
        %v693 = vadd.f32 %v591, %v692
        %v694 = vand.u32 %v347, 4294901760
        %v695 = vsub.f32 %v347, %v694
        %696 = vmatmul.f32.gmra.mxu0 %v695
        %v697 = vpop.f32.mrf.mxu0
        %v698 = vadd.f32 %v595, %v697
        %v699 = vand.u32 %v350, 4294901760
        %v700 = vsub.f32 %v350, %v699
        %701 = vmatmul.f32.gmra.mxu0 %v700
        %v702 = vpop.f32.mrf.mxu0
        %v703 = vadd.f32 %v599, %v702
        %v704 = vand.u32 %v353, 4294901760
        %v705 = vsub.f32 %v353, %v704
        %706 = vmatmul.f32.gmra.mxu0 %v705
        %v707 = vpop.f32.mrf.mxu0
        %v708 = vadd.f32 %v603, %v707
        %709 = vdwg.mxu0
        %710 = vmatpush.msra.mxu0 0.0
        %711 = vmatpush.msra.mxu0 0.0
        %712 = vmatpush.msra.mxu0 0.0
        %713 = vmatpush.msra.mxu0 0.0
        %714 = vmatpush.msra.mxu0 0.0
        %715 = vmatpush.msra.mxu0 0.0
        %716 = vmatpush.msra.mxu0 0.0
        %717 = vmatpush.msra.mxu0 0.0
        %718 = vmatpush.msra.mxu0 0.0
        %719 = vmatpush.msra.mxu0 0.0
        %720 = vmatpush.msra.mxu0 0.0
        %721 = vmatpush.msra.mxu0 0.0
        %v722 = vand.u32 %v302, 4294901760
        %723 = vmatpush.msra.mxu0 %v722
        %v724 = vand.u32 %v301, 4294901760
        %725 = vmatpush.msra.mxu0 %v724
        %v726 = vand.u32 %v300, 4294901760
        %727 = vmatpush.msra.mxu0 %v726
        %v728 = vand.u32 %v299, 4294901760
        %729 = vmatpush.msra.mxu0 %v728
        %v730 = vand.u32 %v308, 4294901760
        %v731 = vsub.f32 %v308, %v730
        %v732 = vand.u32 %v731, 4294901760
        %733 = vmatmul.f32.gmra.mxu0 %v732
        %v734 = vpop.f32.mrf.mxu0
        %v735 = vadd.f32 %v633, %v734
        %v736 = vand.u32 %v311, 4294901760
        %v737 = vsub.f32 %v311, %v736
        %v738 = vand.u32 %v737, 4294901760
        %739 = vmatmul.f32.gmra.mxu0 %v738
        %v740 = vpop.f32.mrf.mxu0
        %v741 = vadd.f32 %v638, %v740
        %v742 = vand.u32 %v314, 4294901760
        %v743 = vsub.f32 %v314, %v742
        %v744 = vand.u32 %v743, 4294901760
        %745 = vmatmul.f32.gmra.mxu0 %v744
        %v746 = vpop.f32.mrf.mxu0
        %v747 = vadd.f32 %v643, %v746
        %v748 = vand.u32 %v317, 4294901760
        %v749 = vsub.f32 %v317, %v748
        %v750 = vand.u32 %v749, 4294901760
        %751 = vmatmul.f32.gmra.mxu0 %v750
        %v752 = vpop.f32.mrf.mxu0
        %v753 = vadd.f32 %v648, %v752
        %v754 = vand.u32 %v320, 4294901760
        %v755 = vsub.f32 %v320, %v754
        %v756 = vand.u32 %v755, 4294901760
        %757 = vmatmul.f32.gmra.mxu0 %v756
        %v758 = vpop.f32.mrf.mxu0
        %v759 = vadd.f32 %v653, %v758
        %v760 = vand.u32 %v323, 4294901760
        %v761 = vsub.f32 %v323, %v760
        %v762 = vand.u32 %v761, 4294901760
        %763 = vmatmul.f32.gmra.mxu0 %v762
        %v764 = vpop.f32.mrf.mxu0
        %v765 = vadd.f32 %v658, %v764
        %v766 = vand.u32 %v326, 4294901760
        %v767 = vsub.f32 %v326, %v766
        %v768 = vand.u32 %v767, 4294901760
        %769 = vmatmul.f32.gmra.mxu0 %v768
        %v770 = vpop.f32.mrf.mxu0
        %v771 = vadd.f32 %v663, %v770
        %v772 = vand.u32 %v329, 4294901760
        %v773 = vsub.f32 %v329, %v772
        %v774 = vand.u32 %v773, 4294901760
        %775 = vmatmul.f32.gmra.mxu0 %v774
        %v776 = vpop.f32.mrf.mxu0
        %v777 = vadd.f32 %v668, %v776
        %v778 = vand.u32 %v332, 4294901760
        %v779 = vsub.f32 %v332, %v778
        %v780 = vand.u32 %v779, 4294901760
        %781 = vmatmul.f32.gmra.mxu0 %v780
        %v782 = vpop.f32.mrf.mxu0
        %v783 = vadd.f32 %v673, %v782
        %v784 = vand.u32 %v335, 4294901760
        %v785 = vsub.f32 %v335, %v784
        %v786 = vand.u32 %v785, 4294901760
        %787 = vmatmul.f32.gmra.mxu0 %v786
        %v788 = vpop.f32.mrf.mxu0
        %v789 = vadd.f32 %v678, %v788
        %v790 = vand.u32 %v338, 4294901760
        %v791 = vsub.f32 %v338, %v790
        %v792 = vand.u32 %v791, 4294901760
        %793 = vmatmul.f32.gmra.mxu0 %v792
        %v794 = vpop.f32.mrf.mxu0
        %v795 = vadd.f32 %v683, %v794
        %v796 = vand.u32 %v341, 4294901760
        %v797 = vsub.f32 %v341, %v796
        %v798 = vand.u32 %v797, 4294901760
        %799 = vmatmul.f32.gmra.mxu0 %v798
        %v800 = vpop.f32.mrf.mxu0
        %v801 = vadd.f32 %v688, %v800
        %v802 = vand.u32 %v344, 4294901760
        %v803 = vsub.f32 %v344, %v802
        %v804 = vand.u32 %v803, 4294901760
        %805 = vmatmul.f32.gmra.mxu0 %v804
        %v806 = vpop.f32.mrf.mxu0
        %v807 = vadd.f32 %v693, %v806
        %v808 = vand.u32 %v347, 4294901760
        %v809 = vsub.f32 %v347, %v808
        %v810 = vand.u32 %v809, 4294901760
        %811 = vmatmul.f32.gmra.mxu0 %v810
        %v812 = vpop.f32.mrf.mxu0
        %v813 = vadd.f32 %v698, %v812
        %v814 = vand.u32 %v350, 4294901760
        %v815 = vsub.f32 %v350, %v814
        %v816 = vand.u32 %v815, 4294901760
        %817 = vmatmul.f32.gmra.mxu0 %v816
        %v818 = vpop.f32.mrf.mxu0
        %v819 = vadd.f32 %v703, %v818
        %v820 = vand.u32 %v353, 4294901760
        %v821 = vsub.f32 %v353, %v820
        %v822 = vand.u32 %v821, 4294901760
        %823 = vmatmul.f32.gmra.mxu0 %v822
        %v824 = vpop.f32.mrf.mxu0
        %v825 = vadd.f32 %v708, %v824
        %826 = vdwg.mxu0
        %827 = vmatpush.msra.mxu0 0.0
        %828 = vmatpush.msra.mxu0 0.0
        %829 = vmatpush.msra.mxu0 0.0
        %830 = vmatpush.msra.mxu0 0.0
        %831 = vmatpush.msra.mxu0 0.0
        %832 = vmatpush.msra.mxu0 0.0
        %833 = vmatpush.msra.mxu0 0.0
        %834 = vmatpush.msra.mxu0 0.0
        %835 = vmatpush.msra.mxu0 0.0
        %836 = vmatpush.msra.mxu0 0.0
        %837 = vmatpush.msra.mxu0 0.0
        %838 = vmatpush.msra.mxu0 0.0
        %v839 = vand.u32 %v302, 4294901760
        %v840 = vsub.f32 %v302, %v839
        %v841 = vand.u32 %v840, 4294901760
        %842 = vmatpush.msra.mxu0 %v841
        %v843 = vand.u32 %v301, 4294901760
        %v844 = vsub.f32 %v301, %v843
        %v845 = vand.u32 %v844, 4294901760
        %846 = vmatpush.msra.mxu0 %v845
        %v847 = vand.u32 %v300, 4294901760
        %v848 = vsub.f32 %v300, %v847
        %v849 = vand.u32 %v848, 4294901760
        %850 = vmatpush.msra.mxu0 %v849
        %v851 = vand.u32 %v299, 4294901760
        %v852 = vsub.f32 %v299, %v851
        %v853 = vand.u32 %v852, 4294901760
        %854 = vmatpush.msra.mxu0 %v853
        %v855 = vand.u32 %v308, 4294901760
        %856 = vmatmul.f32.gmra.mxu0 %v855
        %v857 = vpop.f32.mrf.mxu0
        %v858 = vadd.f32 %v735, %v857
        %v859 = vand.u32 %v311, 4294901760
        %860 = vmatmul.f32.gmra.mxu0 %v859
        %v861 = vpop.f32.mrf.mxu0
        %v862 = vadd.f32 %v741, %v861
        %v863 = vand.u32 %v314, 4294901760
        %864 = vmatmul.f32.gmra.mxu0 %v863
        %v865 = vpop.f32.mrf.mxu0
        %v866 = vadd.f32 %v747, %v865
        %v867 = vand.u32 %v317, 4294901760
        %868 = vmatmul.f32.gmra.mxu0 %v867
        %v869 = vpop.f32.mrf.mxu0
        %v870 = vadd.f32 %v753, %v869
        %v871 = vand.u32 %v320, 4294901760
        %872 = vmatmul.f32.gmra.mxu0 %v871
        %v873 = vpop.f32.mrf.mxu0
        %v874 = vadd.f32 %v759, %v873
        %v875 = vand.u32 %v323, 4294901760
        %876 = vmatmul.f32.gmra.mxu0 %v875
        %v877 = vpop.f32.mrf.mxu0
        %v878 = vadd.f32 %v765, %v877
        %v879 = vand.u32 %v326, 4294901760
        %880 = vmatmul.f32.gmra.mxu0 %v879
        %v881 = vpop.f32.mrf.mxu0
        %v882 = vadd.f32 %v771, %v881
        %v883 = vand.u32 %v329, 4294901760
        %884 = vmatmul.f32.gmra.mxu0 %v883
        %v885 = vpop.f32.mrf.mxu0
        %v886 = vadd.f32 %v777, %v885
        %v887 = vand.u32 %v332, 4294901760
        %888 = vmatmul.f32.gmra.mxu0 %v887
        %v889 = vpop.f32.mrf.mxu0
        %v890 = vadd.f32 %v783, %v889
        %v891 = vand.u32 %v335, 4294901760
        %892 = vmatmul.f32.gmra.mxu0 %v891
        %v893 = vpop.f32.mrf.mxu0
        %v894 = vadd.f32 %v789, %v893
        %v895 = vand.u32 %v338, 4294901760
        %896 = vmatmul.f32.gmra.mxu0 %v895
        %v897 = vpop.f32.mrf.mxu0
        %v898 = vadd.f32 %v795, %v897
        %v899 = vand.u32 %v341, 4294901760
        %900 = vmatmul.f32.gmra.mxu0 %v899
        %v901 = vpop.f32.mrf.mxu0
        %v902 = vadd.f32 %v801, %v901
        %v903 = vand.u32 %v344, 4294901760
        %904 = vmatmul.f32.gmra.mxu0 %v903
        %v905 = vpop.f32.mrf.mxu0
        %v906 = vadd.f32 %v807, %v905
        %v907 = vand.u32 %v347, 4294901760
        %908 = vmatmul.f32.gmra.mxu0 %v907
        %v909 = vpop.f32.mrf.mxu0
        %v910 = vadd.f32 %v813, %v909
        %v911 = vand.u32 %v350, 4294901760
        %912 = vmatmul.f32.gmra.mxu0 %v911
        %v913 = vpop.f32.mrf.mxu0
        %v914 = vadd.f32 %v819, %v913
        %v915 = vand.u32 %v353, 4294901760
        %916 = vmatmul.f32.gmra.mxu0 %v915
        %v917 = vpop.f32.mrf.mxu0
        %v918 = vadd.f32 %v825, %v917
        %919 = vdwg.mxu0
        %920 = vmatpush.msra.mxu0 0.0
        %921 = vmatpush.msra.mxu0 0.0
        %922 = vmatpush.msra.mxu0 0.0
        %923 = vmatpush.msra.mxu0 0.0
        %924 = vmatpush.msra.mxu0 0.0
        %925 = vmatpush.msra.mxu0 0.0
        %926 = vmatpush.msra.mxu0 0.0
        %927 = vmatpush.msra.mxu0 0.0
        %928 = vmatpush.msra.mxu0 0.0
        %929 = vmatpush.msra.mxu0 0.0
        %930 = vmatpush.msra.mxu0 0.0
        %931 = vmatpush.msra.mxu0 0.0
        %v932 = vand.u32 %v302, 4294901760
        %933 = vmatpush.msra.mxu0 %v932
        %v934 = vand.u32 %v301, 4294901760
        %935 = vmatpush.msra.mxu0 %v934
        %v936 = vand.u32 %v300, 4294901760
        %937 = vmatpush.msra.mxu0 %v936
        %v938 = vand.u32 %v299, 4294901760
        %939 = vmatpush.msra.mxu0 %v938
        %v940 = vand.u32 %v308, 4294901760
        %941 = vmatmul.f32.gmra.mxu0 %v940
        %v942 = vpop.f32.mrf.mxu0
        %v943 = vadd.f32 %v858, %v942
        %v944 = vand.u32 %v311, 4294901760
        %945 = vmatmul.f32.gmra.mxu0 %v944
        %v946 = vpop.f32.mrf.mxu0
        %v947 = vadd.f32 %v862, %v946
        %v948 = vand.u32 %v314, 4294901760
        %949 = vmatmul.f32.gmra.mxu0 %v948
        %v950 = vpop.f32.mrf.mxu0
        %v951 = vadd.f32 %v866, %v950
        %v952 = vand.u32 %v317, 4294901760
        %953 = vmatmul.f32.gmra.mxu0 %v952
        %v954 = vpop.f32.mrf.mxu0
        %v955 = vadd.f32 %v870, %v954
        %v956 = vand.u32 %v320, 4294901760
        %957 = vmatmul.f32.gmra.mxu0 %v956
        %v958 = vpop.f32.mrf.mxu0
        %v959 = vadd.f32 %v874, %v958
        %v960 = vand.u32 %v323, 4294901760
        %961 = vmatmul.f32.gmra.mxu0 %v960
        %v962 = vpop.f32.mrf.mxu0
        %v963 = vadd.f32 %v878, %v962
        %v964 = vand.u32 %v326, 4294901760
        %965 = vmatmul.f32.gmra.mxu0 %v964
        %v966 = vpop.f32.mrf.mxu0
        %v967 = vadd.f32 %v882, %v966
        %v968 = vand.u32 %v329, 4294901760
        %969 = vmatmul.f32.gmra.mxu0 %v968
        %v970 = vpop.f32.mrf.mxu0
        %v971 = vadd.f32 %v886, %v970
        %v972 = vand.u32 %v332, 4294901760
        %973 = vmatmul.f32.gmra.mxu0 %v972
        %v974 = vpop.f32.mrf.mxu0
        %v975 = vadd.f32 %v890, %v974
        %v976 = vand.u32 %v335, 4294901760
        %977 = vmatmul.f32.gmra.mxu0 %v976
        %v978 = vpop.f32.mrf.mxu0
        %v979 = vadd.f32 %v894, %v978
        %v980 = vand.u32 %v338, 4294901760
        %981 = vmatmul.f32.gmra.mxu0 %v980
        %v982 = vpop.f32.mrf.mxu0
        %v983 = vadd.f32 %v898, %v982
        %v984 = vand.u32 %v341, 4294901760
        %985 = vmatmul.f32.gmra.mxu0 %v984
        %v986 = vpop.f32.mrf.mxu0
        %v987 = vadd.f32 %v902, %v986
        %v988 = vand.u32 %v344, 4294901760
        %989 = vmatmul.f32.gmra.mxu0 %v988
        %v990 = vpop.f32.mrf.mxu0
        %v991 = vadd.f32 %v906, %v990
        %v992 = vand.u32 %v347, 4294901760
        %993 = vmatmul.f32.gmra.mxu0 %v992
        %v994 = vpop.f32.mrf.mxu0
        %v995 = vadd.f32 %v910, %v994
        %v996 = vand.u32 %v350, 4294901760
        %997 = vmatmul.f32.gmra.mxu0 %v996
        %v998 = vpop.f32.mrf.mxu0
        %v999 = vadd.f32 %v914, %v998
        %v1000 = vand.u32 %v353, 4294901760
        %1001 = vmatmul.f32.gmra.mxu0 %v1000
        %v1002 = vpop.f32.mrf.mxu0
        %v1003 = vadd.f32 %v918, %v1002
        %1004 = vdwg.mxu0
        %v1005 = vmax.f32 %v943, 0.0
        %v1006 = vmax.f32 %v947, 0.0
        %v1007 = vmax.f32 %v951, 0.0
        %v1008 = vmax.f32 %v955, 0.0
        %v1009 = vmax.f32 %v959, 0.0
        %v1010 = vmax.f32 %v963, 0.0
        %v1011 = vmax.f32 %v967, 0.0
        %v1012 = vmax.f32 %v971, 0.0
        %v1013 = vmax.f32 %v975, 0.0
        %v1014 = vmax.f32 %v979, 0.0
        %v1015 = vmax.f32 %v983, 0.0
        %v1016 = vmax.f32 %v987, 0.0
        %v1017 = vmax.f32 %v991, 0.0
        %v1018 = vmax.f32 %v995, 0.0
        %v1019 = vmax.f32 %v999, 0.0
        %v1020 = vmax.f32 %v1003, 0.0
        %v1021 = vld [vmem:[%s3] sm:$0xff]
        %v1022 = vld [vmem:[%s3 + $0x8] sm:$0xff]
        %v1023 = vld [vmem:[%s3 + $0x10] sm:$0xff]
        %v1024 = vld [vmem:[%s3 + $0x18] sm:$0xff]
        %v1025 = vld [vmem:[%s3 + $0x20] sm:$0xff]
        %v1026 = vld [vmem:[%s3 + $0x28] sm:$0xff]
        %v1027 = vld [vmem:[%s3 + $0x30] sm:$0xff]
        %v1028 = vld [vmem:[%s3 + $0x38] sm:$0xff]
        %v1029 = vld [vmem:[%s3 + $0x40] sm:$0xff]
        %v1030 = vld [vmem:[%s3 + $0x48] sm:$0xff]
        %v1031 = vld [vmem:[%s3 + $0x50] sm:$0xff]
        %v1032 = vld [vmem:[%s3 + $0x58] sm:$0xff]
        %v1033 = vld [vmem:[%s3 + $0x60] sm:$0xff]
        %v1034 = vld [vmem:[%s3 + $0x68] sm:$0xff]
        %v1035 = vld [vmem:[%s3 + $0x70] sm:$0xff]
        %v1036 = vld [vmem:[%s3 + $0x78] sm:$0xff]
        %v1038 = vperm.slane %v281, 0
        %v1040 = vand.u32 %v1036, 4294901760
        %1041 = vmatpush.msra.mxu0 %v1040
        %v1042 = vand.u32 %v1035, 4294901760
        %1043 = vmatpush.msra.mxu0 %v1042
        %v1044 = vand.u32 %v1034, 4294901760
        %1045 = vmatpush.msra.mxu0 %v1044
        %v1046 = vand.u32 %v1033, 4294901760
        %1047 = vmatpush.msra.mxu0 %v1046
        %v1048 = vand.u32 %v1032, 4294901760
        %1049 = vmatpush.msra.mxu0 %v1048
        %v1050 = vand.u32 %v1031, 4294901760
        %1051 = vmatpush.msra.mxu0 %v1050
        %v1052 = vand.u32 %v1030, 4294901760
        %1053 = vmatpush.msra.mxu0 %v1052
        %v1054 = vand.u32 %v1029, 4294901760
        %1055 = vmatpush.msra.mxu0 %v1054
        %v1056 = vand.u32 %v1028, 4294901760
        %1057 = vmatpush.msra.mxu0 %v1056
        %v1058 = vand.u32 %v1027, 4294901760
        %1059 = vmatpush.msra.mxu0 %v1058
        %v1060 = vand.u32 %v1026, 4294901760
        %1061 = vmatpush.msra.mxu0 %v1060
        %v1062 = vand.u32 %v1025, 4294901760
        %1063 = vmatpush.msra.mxu0 %v1062
        %v1064 = vand.u32 %v1024, 4294901760
        %1065 = vmatpush.msra.mxu0 %v1064
        %v1066 = vand.u32 %v1023, 4294901760
        %1067 = vmatpush.msra.mxu0 %v1066
        %v1068 = vand.u32 %v1022, 4294901760
        %1069 = vmatpush.msra.mxu0 %v1068
        %v1070 = vand.u32 %v1021, 4294901760
        %1071 = vmatpush.msra.mxu0 %v1070
        %v1072 = vand.u32 %v1005, 4294901760
        %v1073 = vsub.f32 %v1005, %v1072
        %v1074 = vand.u32 %v1073, 4294901760
        %v1075 = vsub.f32 %v1073, %v1074
        %v1076 = vand.u32 %v1075, 4294901760
        %1077 = vmatmul.f32.gmra.mxu0 %v1076
        %v1078 = vpop.f32.mrf.mxu0
        %v1079 = vadd.f32 %v1038, %v1078
        %v1080 = vand.u32 %v1006, 4294901760
        %v1081 = vsub.f32 %v1006, %v1080
        %v1082 = vand.u32 %v1081, 4294901760
        %v1083 = vsub.f32 %v1081, %v1082
        %v1084 = vand.u32 %v1083, 4294901760
        %1085 = vmatmul.f32.gmra.mxu0 %v1084
        %v1086 = vpop.f32.mrf.mxu0
        %v1087 = vadd.f32 %v1038, %v1086
        %v1088 = vand.u32 %v1007, 4294901760
        %v1089 = vsub.f32 %v1007, %v1088
        %v1090 = vand.u32 %v1089, 4294901760
        %v1091 = vsub.f32 %v1089, %v1090
        %v1092 = vand.u32 %v1091, 4294901760
        %1093 = vmatmul.f32.gmra.mxu0 %v1092
        %v1094 = vpop.f32.mrf.mxu0
        %v1095 = vadd.f32 %v1038, %v1094
        %v1096 = vand.u32 %v1008, 4294901760
        %v1097 = vsub.f32 %v1008, %v1096
        %v1098 = vand.u32 %v1097, 4294901760
        %v1099 = vsub.f32 %v1097, %v1098
        %v1100 = vand.u32 %v1099, 4294901760
        %1101 = vmatmul.f32.gmra.mxu0 %v1100
        %v1102 = vpop.f32.mrf.mxu0
        %v1103 = vadd.f32 %v1038, %v1102
        %v1104 = vand.u32 %v1009, 4294901760
        %v1105 = vsub.f32 %v1009, %v1104
        %v1106 = vand.u32 %v1105, 4294901760
        %v1107 = vsub.f32 %v1105, %v1106
        %v1108 = vand.u32 %v1107, 4294901760
        %1109 = vmatmul.f32.gmra.mxu0 %v1108
        %v1110 = vpop.f32.mrf.mxu0
        %v1111 = vadd.f32 %v1038, %v1110
        %v1112 = vand.u32 %v1010, 4294901760
        %v1113 = vsub.f32 %v1010, %v1112
        %v1114 = vand.u32 %v1113, 4294901760
        %v1115 = vsub.f32 %v1113, %v1114
        %v1116 = vand.u32 %v1115, 4294901760
        %1117 = vmatmul.f32.gmra.mxu0 %v1116
        %v1118 = vpop.f32.mrf.mxu0
        %v1119 = vadd.f32 %v1038, %v1118
        %v1120 = vand.u32 %v1011, 4294901760
        %v1121 = vsub.f32 %v1011, %v1120
        %v1122 = vand.u32 %v1121, 4294901760
        %v1123 = vsub.f32 %v1121, %v1122
        %v1124 = vand.u32 %v1123, 4294901760
        %1125 = vmatmul.f32.gmra.mxu0 %v1124
        %v1126 = vpop.f32.mrf.mxu0
        %v1127 = vadd.f32 %v1038, %v1126
        %v1128 = vand.u32 %v1012, 4294901760
        %v1129 = vsub.f32 %v1012, %v1128
        %v1130 = vand.u32 %v1129, 4294901760
        %v1131 = vsub.f32 %v1129, %v1130
        %v1132 = vand.u32 %v1131, 4294901760
        %1133 = vmatmul.f32.gmra.mxu0 %v1132
        %v1134 = vpop.f32.mrf.mxu0
        %v1135 = vadd.f32 %v1038, %v1134
        %v1136 = vand.u32 %v1013, 4294901760
        %v1137 = vsub.f32 %v1013, %v1136
        %v1138 = vand.u32 %v1137, 4294901760
        %v1139 = vsub.f32 %v1137, %v1138
        %v1140 = vand.u32 %v1139, 4294901760
        %1141 = vmatmul.f32.gmra.mxu0 %v1140
        %v1142 = vpop.f32.mrf.mxu0
        %v1143 = vadd.f32 %v1038, %v1142
        %v1144 = vand.u32 %v1014, 4294901760
        %v1145 = vsub.f32 %v1014, %v1144
        %v1146 = vand.u32 %v1145, 4294901760
        %v1147 = vsub.f32 %v1145, %v1146
        %v1148 = vand.u32 %v1147, 4294901760
        %1149 = vmatmul.f32.gmra.mxu0 %v1148
        %v1150 = vpop.f32.mrf.mxu0
        %v1151 = vadd.f32 %v1038, %v1150
        %v1152 = vand.u32 %v1015, 4294901760
        %v1153 = vsub.f32 %v1015, %v1152
        %v1154 = vand.u32 %v1153, 4294901760
        %v1155 = vsub.f32 %v1153, %v1154
        %v1156 = vand.u32 %v1155, 4294901760
        %1157 = vmatmul.f32.gmra.mxu0 %v1156
        %v1158 = vpop.f32.mrf.mxu0
        %v1159 = vadd.f32 %v1038, %v1158
        %v1160 = vand.u32 %v1016, 4294901760
        %v1161 = vsub.f32 %v1016, %v1160
        %v1162 = vand.u32 %v1161, 4294901760
        %v1163 = vsub.f32 %v1161, %v1162
        %v1164 = vand.u32 %v1163, 4294901760
        %1165 = vmatmul.f32.gmra.mxu0 %v1164
        %v1166 = vpop.f32.mrf.mxu0
        %v1167 = vadd.f32 %v1038, %v1166
        %v1168 = vand.u32 %v1017, 4294901760
        %v1169 = vsub.f32 %v1017, %v1168
        %v1170 = vand.u32 %v1169, 4294901760
        %v1171 = vsub.f32 %v1169, %v1170
        %v1172 = vand.u32 %v1171, 4294901760
        %1173 = vmatmul.f32.gmra.mxu0 %v1172
        %v1174 = vpop.f32.mrf.mxu0
        %v1175 = vadd.f32 %v1038, %v1174
        %v1176 = vand.u32 %v1018, 4294901760
        %v1177 = vsub.f32 %v1018, %v1176
        %v1178 = vand.u32 %v1177, 4294901760
        %v1179 = vsub.f32 %v1177, %v1178
        %v1180 = vand.u32 %v1179, 4294901760
        %1181 = vmatmul.f32.gmra.mxu0 %v1180
        %v1182 = vpop.f32.mrf.mxu0
        %v1183 = vadd.f32 %v1038, %v1182
        %v1184 = vand.u32 %v1019, 4294901760
        %v1185 = vsub.f32 %v1019, %v1184
        %v1186 = vand.u32 %v1185, 4294901760
        %v1187 = vsub.f32 %v1185, %v1186
        %v1188 = vand.u32 %v1187, 4294901760
        %1189 = vmatmul.f32.gmra.mxu0 %v1188
        %v1190 = vpop.f32.mrf.mxu0
        %v1191 = vadd.f32 %v1038, %v1190
        %v1192 = vand.u32 %v1020, 4294901760
        %v1193 = vsub.f32 %v1020, %v1192
        %v1194 = vand.u32 %v1193, 4294901760
        %v1195 = vsub.f32 %v1193, %v1194
        %v1196 = vand.u32 %v1195, 4294901760
        %1197 = vmatmul.f32.gmra.mxu0 %v1196
        %v1198 = vpop.f32.mrf.mxu0
        %v1199 = vadd.f32 %v1038, %v1198
        %1200 = vdwg.mxu0
        %v1201 = vand.u32 %v1036, 4294901760
        %v1202 = vsub.f32 %v1036, %v1201
        %v1203 = vand.u32 %v1202, 4294901760
        %v1204 = vsub.f32 %v1202, %v1203
        %v1205 = vand.u32 %v1204, 4294901760
        %1206 = vmatpush.msra.mxu0 %v1205
        %v1207 = vand.u32 %v1035, 4294901760
        %v1208 = vsub.f32 %v1035, %v1207
        %v1209 = vand.u32 %v1208, 4294901760
        %v1210 = vsub.f32 %v1208, %v1209
        %v1211 = vand.u32 %v1210, 4294901760
        %1212 = vmatpush.msra.mxu0 %v1211
        %v1213 = vand.u32 %v1034, 4294901760
        %v1214 = vsub.f32 %v1034, %v1213
        %v1215 = vand.u32 %v1214, 4294901760
        %v1216 = vsub.f32 %v1214, %v1215
        %v1217 = vand.u32 %v1216, 4294901760
        %1218 = vmatpush.msra.mxu0 %v1217
        %v1219 = vand.u32 %v1033, 4294901760
        %v1220 = vsub.f32 %v1033, %v1219
        %v1221 = vand.u32 %v1220, 4294901760
        %v1222 = vsub.f32 %v1220, %v1221
        %v1223 = vand.u32 %v1222, 4294901760
        %1224 = vmatpush.msra.mxu0 %v1223
        %v1225 = vand.u32 %v1032, 4294901760
        %v1226 = vsub.f32 %v1032, %v1225
        %v1227 = vand.u32 %v1226, 4294901760
        %v1228 = vsub.f32 %v1226, %v1227
        %v1229 = vand.u32 %v1228, 4294901760
        %1230 = vmatpush.msra.mxu0 %v1229
        %v1231 = vand.u32 %v1031, 4294901760
        %v1232 = vsub.f32 %v1031, %v1231
        %v1233 = vand.u32 %v1232, 4294901760
        %v1234 = vsub.f32 %v1232, %v1233
        %v1235 = vand.u32 %v1234, 4294901760
        %1236 = vmatpush.msra.mxu0 %v1235
        %v1237 = vand.u32 %v1030, 4294901760
        %v1238 = vsub.f32 %v1030, %v1237
        %v1239 = vand.u32 %v1238, 4294901760
        %v1240 = vsub.f32 %v1238, %v1239
        %v1241 = vand.u32 %v1240, 4294901760
        %1242 = vmatpush.msra.mxu0 %v1241
        %v1243 = vand.u32 %v1029, 4294901760
        %v1244 = vsub.f32 %v1029, %v1243
        %v1245 = vand.u32 %v1244, 4294901760
        %v1246 = vsub.f32 %v1244, %v1245
        %v1247 = vand.u32 %v1246, 4294901760
        %1248 = vmatpush.msra.mxu0 %v1247
        %v1249 = vand.u32 %v1028, 4294901760
        %v1250 = vsub.f32 %v1028, %v1249
        %v1251 = vand.u32 %v1250, 4294901760
        %v1252 = vsub.f32 %v1250, %v1251
        %v1253 = vand.u32 %v1252, 4294901760
        %1254 = vmatpush.msra.mxu0 %v1253
        %v1255 = vand.u32 %v1027, 4294901760
        %v1256 = vsub.f32 %v1027, %v1255
        %v1257 = vand.u32 %v1256, 4294901760
        %v1258 = vsub.f32 %v1256, %v1257
        %v1259 = vand.u32 %v1258, 4294901760
        %1260 = vmatpush.msra.mxu0 %v1259
        %v1261 = vand.u32 %v1026, 4294901760
        %v1262 = vsub.f32 %v1026, %v1261
        %v1263 = vand.u32 %v1262, 4294901760
        %v1264 = vsub.f32 %v1262, %v1263
        %v1265 = vand.u32 %v1264, 4294901760
        %1266 = vmatpush.msra.mxu0 %v1265
        %v1267 = vand.u32 %v1025, 4294901760
        %v1268 = vsub.f32 %v1025, %v1267
        %v1269 = vand.u32 %v1268, 4294901760
        %v1270 = vsub.f32 %v1268, %v1269
        %v1271 = vand.u32 %v1270, 4294901760
        %1272 = vmatpush.msra.mxu0 %v1271
        %v1273 = vand.u32 %v1024, 4294901760
        %v1274 = vsub.f32 %v1024, %v1273
        %v1275 = vand.u32 %v1274, 4294901760
        %v1276 = vsub.f32 %v1274, %v1275
        %v1277 = vand.u32 %v1276, 4294901760
        %1278 = vmatpush.msra.mxu0 %v1277
        %v1279 = vand.u32 %v1023, 4294901760
        %v1280 = vsub.f32 %v1023, %v1279
        %v1281 = vand.u32 %v1280, 4294901760
        %v1282 = vsub.f32 %v1280, %v1281
        %v1283 = vand.u32 %v1282, 4294901760
        %1284 = vmatpush.msra.mxu0 %v1283
        %v1285 = vand.u32 %v1022, 4294901760
        %v1286 = vsub.f32 %v1022, %v1285
        %v1287 = vand.u32 %v1286, 4294901760
        %v1288 = vsub.f32 %v1286, %v1287
        %v1289 = vand.u32 %v1288, 4294901760
        %1290 = vmatpush.msra.mxu0 %v1289
        %v1291 = vand.u32 %v1021, 4294901760
        %v1292 = vsub.f32 %v1021, %v1291
        %v1293 = vand.u32 %v1292, 4294901760
        %v1294 = vsub.f32 %v1292, %v1293
        %v1295 = vand.u32 %v1294, 4294901760
        %1296 = vmatpush.msra.mxu0 %v1295
        %v1297 = vand.u32 %v1005, 4294901760
        %1298 = vmatmul.f32.gmra.mxu0 %v1297
        %v1299 = vpop.f32.mrf.mxu0
        %v1300 = vadd.f32 %v1079, %v1299
        %v1301 = vand.u32 %v1006, 4294901760
        %1302 = vmatmul.f32.gmra.mxu0 %v1301
        %v1303 = vpop.f32.mrf.mxu0
        %v1304 = vadd.f32 %v1087, %v1303
        %v1305 = vand.u32 %v1007, 4294901760
        %1306 = vmatmul.f32.gmra.mxu0 %v1305
        %v1307 = vpop.f32.mrf.mxu0
        %v1308 = vadd.f32 %v1095, %v1307
        %v1309 = vand.u32 %v1008, 4294901760
        %1310 = vmatmul.f32.gmra.mxu0 %v1309
        %v1311 = vpop.f32.mrf.mxu0
        %v1312 = vadd.f32 %v1103, %v1311
        %v1313 = vand.u32 %v1009, 4294901760
        %1314 = vmatmul.f32.gmra.mxu0 %v1313
        %v1315 = vpop.f32.mrf.mxu0
        %v1316 = vadd.f32 %v1111, %v1315
        %v1317 = vand.u32 %v1010, 4294901760
        %1318 = vmatmul.f32.gmra.mxu0 %v1317
        %v1319 = vpop.f32.mrf.mxu0
        %v1320 = vadd.f32 %v1119, %v1319
        %v1321 = vand.u32 %v1011, 4294901760
        %1322 = vmatmul.f32.gmra.mxu0 %v1321
        %v1323 = vpop.f32.mrf.mxu0
        %v1324 = vadd.f32 %v1127, %v1323
        %v1325 = vand.u32 %v1012, 4294901760
        %1326 = vmatmul.f32.gmra.mxu0 %v1325
        %v1327 = vpop.f32.mrf.mxu0
        %v1328 = vadd.f32 %v1135, %v1327
        %v1329 = vand.u32 %v1013, 4294901760
        %1330 = vmatmul.f32.gmra.mxu0 %v1329
        %v1331 = vpop.f32.mrf.mxu0
        %v1332 = vadd.f32 %v1143, %v1331
        %v1333 = vand.u32 %v1014, 4294901760
        %1334 = vmatmul.f32.gmra.mxu0 %v1333
        %v1335 = vpop.f32.mrf.mxu0
        %v1336 = vadd.f32 %v1151, %v1335
        %v1337 = vand.u32 %v1015, 4294901760
        %1338 = vmatmul.f32.gmra.mxu0 %v1337
        %v1339 = vpop.f32.mrf.mxu0
        %v1340 = vadd.f32 %v1159, %v1339
        %v1341 = vand.u32 %v1016, 4294901760
        %1342 = vmatmul.f32.gmra.mxu0 %v1341
        %v1343 = vpop.f32.mrf.mxu0
        %v1344 = vadd.f32 %v1167, %v1343
        %v1345 = vand.u32 %v1017, 4294901760
        %1346 = vmatmul.f32.gmra.mxu0 %v1345
        %v1347 = vpop.f32.mrf.mxu0
        %v1348 = vadd.f32 %v1175, %v1347
        %v1349 = vand.u32 %v1018, 4294901760
        %1350 = vmatmul.f32.gmra.mxu0 %v1349
        %v1351 = vpop.f32.mrf.mxu0
        %v1352 = vadd.f32 %v1183, %v1351
        %v1353 = vand.u32 %v1019, 4294901760
        %1354 = vmatmul.f32.gmra.mxu0 %v1353
        %v1355 = vpop.f32.mrf.mxu0
        %v1356 = vadd.f32 %v1191, %v1355
        %v1357 = vand.u32 %v1020, 4294901760
        %1358 = vmatmul.f32.gmra.mxu0 %v1357
        %v1359 = vpop.f32.mrf.mxu0
        %v1360 = vadd.f32 %v1199, %v1359
        %1361 = vdwg.mxu0
        %v1362 = vand.u32 %v1036, 4294901760
        %v1363 = vsub.f32 %v1036, %v1362
        %1364 = vmatpush.msra.mxu0 %v1363
        %v1365 = vand.u32 %v1035, 4294901760
        %v1366 = vsub.f32 %v1035, %v1365
        %1367 = vmatpush.msra.mxu0 %v1366
        %v1368 = vand.u32 %v1034, 4294901760
        %v1369 = vsub.f32 %v1034, %v1368
        %1370 = vmatpush.msra.mxu0 %v1369
        %v1371 = vand.u32 %v1033, 4294901760
        %v1372 = vsub.f32 %v1033, %v1371
        %1373 = vmatpush.msra.mxu0 %v1372
        %v1374 = vand.u32 %v1032, 4294901760
        %v1375 = vsub.f32 %v1032, %v1374
        %1376 = vmatpush.msra.mxu0 %v1375
        %v1377 = vand.u32 %v1031, 4294901760
        %v1378 = vsub.f32 %v1031, %v1377
        %1379 = vmatpush.msra.mxu0 %v1378
        %v1380 = vand.u32 %v1030, 4294901760
        %v1381 = vsub.f32 %v1030, %v1380
        %1382 = vmatpush.msra.mxu0 %v1381
        %v1383 = vand.u32 %v1029, 4294901760
        %v1384 = vsub.f32 %v1029, %v1383
        %1385 = vmatpush.msra.mxu0 %v1384
        %v1386 = vand.u32 %v1028, 4294901760
        %v1387 = vsub.f32 %v1028, %v1386
        %1388 = vmatpush.msra.mxu0 %v1387
        %v1389 = vand.u32 %v1027, 4294901760
        %v1390 = vsub.f32 %v1027, %v1389
        %1391 = vmatpush.msra.mxu0 %v1390
        %v1392 = vand.u32 %v1026, 4294901760
        %v1393 = vsub.f32 %v1026, %v1392
        %1394 = vmatpush.msra.mxu0 %v1393
        %v1395 = vand.u32 %v1025, 4294901760
        %v1396 = vsub.f32 %v1025, %v1395
        %1397 = vmatpush.msra.mxu0 %v1396
        %v1398 = vand.u32 %v1024, 4294901760
        %v1399 = vsub.f32 %v1024, %v1398
        %1400 = vmatpush.msra.mxu0 %v1399
        %v1401 = vand.u32 %v1023, 4294901760
        %v1402 = vsub.f32 %v1023, %v1401
        %1403 = vmatpush.msra.mxu0 %v1402
        %v1404 = vand.u32 %v1022, 4294901760
        %v1405 = vsub.f32 %v1022, %v1404
        %1406 = vmatpush.msra.mxu0 %v1405
        %v1407 = vand.u32 %v1021, 4294901760
        %v1408 = vsub.f32 %v1021, %v1407
        %1409 = vmatpush.msra.mxu0 %v1408
        %v1410 = vand.u32 %v1005, 4294901760
        %v1411 = vsub.f32 %v1005, %v1410
        %1412 = vmatmul.f32.gmra.mxu0 %v1411
        %v1413 = vpop.f32.mrf.mxu0
        %v1414 = vadd.f32 %v1300, %v1413
        %v1415 = vand.u32 %v1006, 4294901760
        %v1416 = vsub.f32 %v1006, %v1415
        %1417 = vmatmul.f32.gmra.mxu0 %v1416
        %v1418 = vpop.f32.mrf.mxu0
        %v1419 = vadd.f32 %v1304, %v1418
        %v1420 = vand.u32 %v1007, 4294901760
        %v1421 = vsub.f32 %v1007, %v1420
        %1422 = vmatmul.f32.gmra.mxu0 %v1421
        %v1423 = vpop.f32.mrf.mxu0
        %v1424 = vadd.f32 %v1308, %v1423
        %v1425 = vand.u32 %v1008, 4294901760
        %v1426 = vsub.f32 %v1008, %v1425
        %1427 = vmatmul.f32.gmra.mxu0 %v1426
        %v1428 = vpop.f32.mrf.mxu0
        %v1429 = vadd.f32 %v1312, %v1428
        %v1430 = vand.u32 %v1009, 4294901760
        %v1431 = vsub.f32 %v1009, %v1430
        %1432 = vmatmul.f32.gmra.mxu0 %v1431
        %v1433 = vpop.f32.mrf.mxu0
        %v1434 = vadd.f32 %v1316, %v1433
        %v1435 = vand.u32 %v1010, 4294901760
        %v1436 = vsub.f32 %v1010, %v1435
        %1437 = vmatmul.f32.gmra.mxu0 %v1436
        %v1438 = vpop.f32.mrf.mxu0
        %v1439 = vadd.f32 %v1320, %v1438
        %v1440 = vand.u32 %v1011, 4294901760
        %v1441 = vsub.f32 %v1011, %v1440
        %1442 = vmatmul.f32.gmra.mxu0 %v1441
        %v1443 = vpop.f32.mrf.mxu0
        %v1444 = vadd.f32 %v1324, %v1443
        %v1445 = vand.u32 %v1012, 4294901760
        %v1446 = vsub.f32 %v1012, %v1445
        %1447 = vmatmul.f32.gmra.mxu0 %v1446
        %v1448 = vpop.f32.mrf.mxu0
        %v1449 = vadd.f32 %v1328, %v1448
        %v1450 = vand.u32 %v1013, 4294901760
        %v1451 = vsub.f32 %v1013, %v1450
        %1452 = vmatmul.f32.gmra.mxu0 %v1451
        %v1453 = vpop.f32.mrf.mxu0
        %v1454 = vadd.f32 %v1332, %v1453
        %v1455 = vand.u32 %v1014, 4294901760
        %v1456 = vsub.f32 %v1014, %v1455
        %1457 = vmatmul.f32.gmra.mxu0 %v1456
        %v1458 = vpop.f32.mrf.mxu0
        %v1459 = vadd.f32 %v1336, %v1458
        %v1460 = vand.u32 %v1015, 4294901760
        %v1461 = vsub.f32 %v1015, %v1460
        %1462 = vmatmul.f32.gmra.mxu0 %v1461
        %v1463 = vpop.f32.mrf.mxu0
        %v1464 = vadd.f32 %v1340, %v1463
        %v1465 = vand.u32 %v1016, 4294901760
        %v1466 = vsub.f32 %v1016, %v1465
        %1467 = vmatmul.f32.gmra.mxu0 %v1466
        %v1468 = vpop.f32.mrf.mxu0
        %v1469 = vadd.f32 %v1344, %v1468
        %v1470 = vand.u32 %v1017, 4294901760
        %v1471 = vsub.f32 %v1017, %v1470
        %1472 = vmatmul.f32.gmra.mxu0 %v1471
        %v1473 = vpop.f32.mrf.mxu0
        %v1474 = vadd.f32 %v1348, %v1473
        %v1475 = vand.u32 %v1018, 4294901760
        %v1476 = vsub.f32 %v1018, %v1475
        %1477 = vmatmul.f32.gmra.mxu0 %v1476
        %v1478 = vpop.f32.mrf.mxu0
        %v1479 = vadd.f32 %v1352, %v1478
        %v1480 = vand.u32 %v1019, 4294901760
        %v1481 = vsub.f32 %v1019, %v1480
        %1482 = vmatmul.f32.gmra.mxu0 %v1481
        %v1483 = vpop.f32.mrf.mxu0
        %v1484 = vadd.f32 %v1356, %v1483
        %v1485 = vand.u32 %v1020, 4294901760
        %v1486 = vsub.f32 %v1020, %v1485
        %1487 = vmatmul.f32.gmra.mxu0 %v1486
        %v1488 = vpop.f32.mrf.mxu0
        %v1489 = vadd.f32 %v1360, %v1488
        %1490 = vdwg.mxu0
        %v1491 = vand.u32 %v1036, 4294901760
        %1492 = vmatpush.msra.mxu0 %v1491
        %v1493 = vand.u32 %v1035, 4294901760
        %1494 = vmatpush.msra.mxu0 %v1493
        %v1495 = vand.u32 %v1034, 4294901760
        %1496 = vmatpush.msra.mxu0 %v1495
        %v1497 = vand.u32 %v1033, 4294901760
        %1498 = vmatpush.msra.mxu0 %v1497
        %v1499 = vand.u32 %v1032, 4294901760
        %1500 = vmatpush.msra.mxu0 %v1499
        %v1501 = vand.u32 %v1031, 4294901760
        %1502 = vmatpush.msra.mxu0 %v1501
        %v1503 = vand.u32 %v1030, 4294901760
        %1504 = vmatpush.msra.mxu0 %v1503
        %v1505 = vand.u32 %v1029, 4294901760
        %1506 = vmatpush.msra.mxu0 %v1505
        %v1507 = vand.u32 %v1028, 4294901760
        %1508 = vmatpush.msra.mxu0 %v1507
        %v1509 = vand.u32 %v1027, 4294901760
        %1510 = vmatpush.msra.mxu0 %v1509
        %v1511 = vand.u32 %v1026, 4294901760
        %1512 = vmatpush.msra.mxu0 %v1511
        %v1513 = vand.u32 %v1025, 4294901760
        %1514 = vmatpush.msra.mxu0 %v1513
        %v1515 = vand.u32 %v1024, 4294901760
        %1516 = vmatpush.msra.mxu0 %v1515
        %v1517 = vand.u32 %v1023, 4294901760
        %1518 = vmatpush.msra.mxu0 %v1517
        %v1519 = vand.u32 %v1022, 4294901760
        %1520 = vmatpush.msra.mxu0 %v1519
        %v1521 = vand.u32 %v1021, 4294901760
        %1522 = vmatpush.msra.mxu0 %v1521
        %v1523 = vand.u32 %v1005, 4294901760
        %v1524 = vsub.f32 %v1005, %v1523
        %v1525 = vand.u32 %v1524, 4294901760
        %1526 = vmatmul.f32.gmra.mxu0 %v1525
        %v1527 = vpop.f32.mrf.mxu0
        %v1528 = vadd.f32 %v1414, %v1527
        %v1529 = vand.u32 %v1006, 4294901760
        %v1530 = vsub.f32 %v1006, %v1529
        %v1531 = vand.u32 %v1530, 4294901760
        %1532 = vmatmul.f32.gmra.mxu0 %v1531
        %v1533 = vpop.f32.mrf.mxu0
        %v1534 = vadd.f32 %v1419, %v1533
        %v1535 = vand.u32 %v1007, 4294901760
        %v1536 = vsub.f32 %v1007, %v1535
        %v1537 = vand.u32 %v1536, 4294901760
        %1538 = vmatmul.f32.gmra.mxu0 %v1537
        %v1539 = vpop.f32.mrf.mxu0
        %v1540 = vadd.f32 %v1424, %v1539
        %v1541 = vand.u32 %v1008, 4294901760
        %v1542 = vsub.f32 %v1008, %v1541
        %v1543 = vand.u32 %v1542, 4294901760
        %1544 = vmatmul.f32.gmra.mxu0 %v1543
        %v1545 = vpop.f32.mrf.mxu0
        %v1546 = vadd.f32 %v1429, %v1545
        %v1547 = vand.u32 %v1009, 4294901760
        %v1548 = vsub.f32 %v1009, %v1547
        %v1549 = vand.u32 %v1548, 4294901760
        %1550 = vmatmul.f32.gmra.mxu0 %v1549
        %v1551 = vpop.f32.mrf.mxu0
        %v1552 = vadd.f32 %v1434, %v1551
        %v1553 = vand.u32 %v1010, 4294901760
        %v1554 = vsub.f32 %v1010, %v1553
        %v1555 = vand.u32 %v1554, 4294901760
        %1556 = vmatmul.f32.gmra.mxu0 %v1555
        %v1557 = vpop.f32.mrf.mxu0
        %v1558 = vadd.f32 %v1439, %v1557
        %v1559 = vand.u32 %v1011, 4294901760
        %v1560 = vsub.f32 %v1011, %v1559
        %v1561 = vand.u32 %v1560, 4294901760
        %1562 = vmatmul.f32.gmra.mxu0 %v1561
        %v1563 = vpop.f32.mrf.mxu0
        %v1564 = vadd.f32 %v1444, %v1563
        %v1565 = vand.u32 %v1012, 4294901760
        %v1566 = vsub.f32 %v1012, %v1565
        %v1567 = vand.u32 %v1566, 4294901760
        %1568 = vmatmul.f32.gmra.mxu0 %v1567
        %v1569 = vpop.f32.mrf.mxu0
        %v1570 = vadd.f32 %v1449, %v1569
        %v1571 = vand.u32 %v1013, 4294901760
        %v1572 = vsub.f32 %v1013, %v1571
        %v1573 = vand.u32 %v1572, 4294901760
        %1574 = vmatmul.f32.gmra.mxu0 %v1573
        %v1575 = vpop.f32.mrf.mxu0
        %v1576 = vadd.f32 %v1454, %v1575
        %v1577 = vand.u32 %v1014, 4294901760
        %v1578 = vsub.f32 %v1014, %v1577
        %v1579 = vand.u32 %v1578, 4294901760
        %1580 = vmatmul.f32.gmra.mxu0 %v1579
        %v1581 = vpop.f32.mrf.mxu0
        %v1582 = vadd.f32 %v1459, %v1581
        %v1583 = vand.u32 %v1015, 4294901760
        %v1584 = vsub.f32 %v1015, %v1583
        %v1585 = vand.u32 %v1584, 4294901760
        %1586 = vmatmul.f32.gmra.mxu0 %v1585
        %v1587 = vpop.f32.mrf.mxu0
        %v1588 = vadd.f32 %v1464, %v1587
        %v1589 = vand.u32 %v1016, 4294901760
        %v1590 = vsub.f32 %v1016, %v1589
        %v1591 = vand.u32 %v1590, 4294901760
        %1592 = vmatmul.f32.gmra.mxu0 %v1591
        %v1593 = vpop.f32.mrf.mxu0
        %v1594 = vadd.f32 %v1469, %v1593
        %v1595 = vand.u32 %v1017, 4294901760
        %v1596 = vsub.f32 %v1017, %v1595
        %v1597 = vand.u32 %v1596, 4294901760
        %1598 = vmatmul.f32.gmra.mxu0 %v1597
        %v1599 = vpop.f32.mrf.mxu0
        %v1600 = vadd.f32 %v1474, %v1599
        %v1601 = vand.u32 %v1018, 4294901760
        %v1602 = vsub.f32 %v1018, %v1601
        %v1603 = vand.u32 %v1602, 4294901760
        %1604 = vmatmul.f32.gmra.mxu0 %v1603
        %v1605 = vpop.f32.mrf.mxu0
        %v1606 = vadd.f32 %v1479, %v1605
        %v1607 = vand.u32 %v1019, 4294901760
        %v1608 = vsub.f32 %v1019, %v1607
        %v1609 = vand.u32 %v1608, 4294901760
        %1610 = vmatmul.f32.gmra.mxu0 %v1609
        %v1611 = vpop.f32.mrf.mxu0
        %v1612 = vadd.f32 %v1484, %v1611
        %v1613 = vand.u32 %v1020, 4294901760
        %v1614 = vsub.f32 %v1020, %v1613
        %v1615 = vand.u32 %v1614, 4294901760
        %1616 = vmatmul.f32.gmra.mxu0 %v1615
        %v1617 = vpop.f32.mrf.mxu0
        %v1618 = vadd.f32 %v1489, %v1617
        %1619 = vdwg.mxu0
        %v1620 = vand.u32 %v1036, 4294901760
        %v1621 = vsub.f32 %v1036, %v1620
        %v1622 = vand.u32 %v1621, 4294901760
        %1623 = vmatpush.msra.mxu0 %v1622
        %v1624 = vand.u32 %v1035, 4294901760
        %v1625 = vsub.f32 %v1035, %v1624
        %v1626 = vand.u32 %v1625, 4294901760
        %1627 = vmatpush.msra.mxu0 %v1626
        %v1628 = vand.u32 %v1034, 4294901760
        %v1629 = vsub.f32 %v1034, %v1628
        %v1630 = vand.u32 %v1629, 4294901760
        %1631 = vmatpush.msra.mxu0 %v1630
        %v1632 = vand.u32 %v1033, 4294901760
        %v1633 = vsub.f32 %v1033, %v1632
        %v1634 = vand.u32 %v1633, 4294901760
        %1635 = vmatpush.msra.mxu0 %v1634
        %v1636 = vand.u32 %v1032, 4294901760
        %v1637 = vsub.f32 %v1032, %v1636
        %v1638 = vand.u32 %v1637, 4294901760
        %1639 = vmatpush.msra.mxu0 %v1638
        %v1640 = vand.u32 %v1031, 4294901760
        %v1641 = vsub.f32 %v1031, %v1640
        %v1642 = vand.u32 %v1641, 4294901760
        %1643 = vmatpush.msra.mxu0 %v1642
        %v1644 = vand.u32 %v1030, 4294901760
        %v1645 = vsub.f32 %v1030, %v1644
        %v1646 = vand.u32 %v1645, 4294901760
        %1647 = vmatpush.msra.mxu0 %v1646
        %v1648 = vand.u32 %v1029, 4294901760
        %v1649 = vsub.f32 %v1029, %v1648
        %v1650 = vand.u32 %v1649, 4294901760
        %1651 = vmatpush.msra.mxu0 %v1650
        %v1652 = vand.u32 %v1028, 4294901760
        %v1653 = vsub.f32 %v1028, %v1652
        %v1654 = vand.u32 %v1653, 4294901760
        %1655 = vmatpush.msra.mxu0 %v1654
        %v1656 = vand.u32 %v1027, 4294901760
        %v1657 = vsub.f32 %v1027, %v1656
        %v1658 = vand.u32 %v1657, 4294901760
        %1659 = vmatpush.msra.mxu0 %v1658
        %v1660 = vand.u32 %v1026, 4294901760
        %v1661 = vsub.f32 %v1026, %v1660
        %v1662 = vand.u32 %v1661, 4294901760
        %1663 = vmatpush.msra.mxu0 %v1662
        %v1664 = vand.u32 %v1025, 4294901760
        %v1665 = vsub.f32 %v1025, %v1664
        %v1666 = vand.u32 %v1665, 4294901760
        %1667 = vmatpush.msra.mxu0 %v1666
        %v1668 = vand.u32 %v1024, 4294901760
        %v1669 = vsub.f32 %v1024, %v1668
        %v1670 = vand.u32 %v1669, 4294901760
        %1671 = vmatpush.msra.mxu0 %v1670
        %v1672 = vand.u32 %v1023, 4294901760
        %v1673 = vsub.f32 %v1023, %v1672
        %v1674 = vand.u32 %v1673, 4294901760
        %1675 = vmatpush.msra.mxu0 %v1674
        %v1676 = vand.u32 %v1022, 4294901760
        %v1677 = vsub.f32 %v1022, %v1676
        %v1678 = vand.u32 %v1677, 4294901760
        %1679 = vmatpush.msra.mxu0 %v1678
        %v1680 = vand.u32 %v1021, 4294901760
        %v1681 = vsub.f32 %v1021, %v1680
        %v1682 = vand.u32 %v1681, 4294901760
        %1683 = vmatpush.msra.mxu0 %v1682
        %v1684 = vand.u32 %v1005, 4294901760
        %1685 = vmatmul.f32.gmra.mxu0 %v1684
        %v1686 = vpop.f32.mrf.mxu0
        %v1687 = vadd.f32 %v1528, %v1686
        %v1688 = vand.u32 %v1006, 4294901760
        %1689 = vmatmul.f32.gmra.mxu0 %v1688
        %v1690 = vpop.f32.mrf.mxu0
        %v1691 = vadd.f32 %v1534, %v1690
        %v1692 = vand.u32 %v1007, 4294901760
        %1693 = vmatmul.f32.gmra.mxu0 %v1692
        %v1694 = vpop.f32.mrf.mxu0
        %v1695 = vadd.f32 %v1540, %v1694
        %v1696 = vand.u32 %v1008, 4294901760
        %1697 = vmatmul.f32.gmra.mxu0 %v1696
        %v1698 = vpop.f32.mrf.mxu0
        %v1699 = vadd.f32 %v1546, %v1698
        %v1700 = vand.u32 %v1009, 4294901760
        %1701 = vmatmul.f32.gmra.mxu0 %v1700
        %v1702 = vpop.f32.mrf.mxu0
        %v1703 = vadd.f32 %v1552, %v1702
        %v1704 = vand.u32 %v1010, 4294901760
        %1705 = vmatmul.f32.gmra.mxu0 %v1704
        %v1706 = vpop.f32.mrf.mxu0
        %v1707 = vadd.f32 %v1558, %v1706
        %v1708 = vand.u32 %v1011, 4294901760
        %1709 = vmatmul.f32.gmra.mxu0 %v1708
        %v1710 = vpop.f32.mrf.mxu0
        %v1711 = vadd.f32 %v1564, %v1710
        %v1712 = vand.u32 %v1012, 4294901760
        %1713 = vmatmul.f32.gmra.mxu0 %v1712
        %v1714 = vpop.f32.mrf.mxu0
        %v1715 = vadd.f32 %v1570, %v1714
        %v1716 = vand.u32 %v1013, 4294901760
        %1717 = vmatmul.f32.gmra.mxu0 %v1716
        %v1718 = vpop.f32.mrf.mxu0
        %v1719 = vadd.f32 %v1576, %v1718
        %v1720 = vand.u32 %v1014, 4294901760
        %1721 = vmatmul.f32.gmra.mxu0 %v1720
        %v1722 = vpop.f32.mrf.mxu0
        %v1723 = vadd.f32 %v1582, %v1722
        %v1724 = vand.u32 %v1015, 4294901760
        %1725 = vmatmul.f32.gmra.mxu0 %v1724
        %v1726 = vpop.f32.mrf.mxu0
        %v1727 = vadd.f32 %v1588, %v1726
        %v1728 = vand.u32 %v1016, 4294901760
        %1729 = vmatmul.f32.gmra.mxu0 %v1728
        %v1730 = vpop.f32.mrf.mxu0
        %v1731 = vadd.f32 %v1594, %v1730
        %v1732 = vand.u32 %v1017, 4294901760
        %1733 = vmatmul.f32.gmra.mxu0 %v1732
        %v1734 = vpop.f32.mrf.mxu0
        %v1735 = vadd.f32 %v1600, %v1734
        %v1736 = vand.u32 %v1018, 4294901760
        %1737 = vmatmul.f32.gmra.mxu0 %v1736
        %v1738 = vpop.f32.mrf.mxu0
        %v1739 = vadd.f32 %v1606, %v1738
        %v1740 = vand.u32 %v1019, 4294901760
        %1741 = vmatmul.f32.gmra.mxu0 %v1740
        %v1742 = vpop.f32.mrf.mxu0
        %v1743 = vadd.f32 %v1612, %v1742
        %v1744 = vand.u32 %v1020, 4294901760
        %1745 = vmatmul.f32.gmra.mxu0 %v1744
        %v1746 = vpop.f32.mrf.mxu0
        %v1747 = vadd.f32 %v1618, %v1746
        %1748 = vdwg.mxu0
        %v1749 = vand.u32 %v1036, 4294901760
        %1750 = vmatpush.msra.mxu0 %v1749
        %v1751 = vand.u32 %v1035, 4294901760
        %1752 = vmatpush.msra.mxu0 %v1751
        %v1753 = vand.u32 %v1034, 4294901760
        %1754 = vmatpush.msra.mxu0 %v1753
        %v1755 = vand.u32 %v1033, 4294901760
        %1756 = vmatpush.msra.mxu0 %v1755
        %v1757 = vand.u32 %v1032, 4294901760
        %1758 = vmatpush.msra.mxu0 %v1757
        %v1759 = vand.u32 %v1031, 4294901760
        %1760 = vmatpush.msra.mxu0 %v1759
        %v1761 = vand.u32 %v1030, 4294901760
        %1762 = vmatpush.msra.mxu0 %v1761
        %v1763 = vand.u32 %v1029, 4294901760
        %1764 = vmatpush.msra.mxu0 %v1763
        %v1765 = vand.u32 %v1028, 4294901760
        %1766 = vmatpush.msra.mxu0 %v1765
        %v1767 = vand.u32 %v1027, 4294901760
        %1768 = vmatpush.msra.mxu0 %v1767
        %v1769 = vand.u32 %v1026, 4294901760
        %1770 = vmatpush.msra.mxu0 %v1769
        %v1771 = vand.u32 %v1025, 4294901760
        %1772 = vmatpush.msra.mxu0 %v1771
        %v1773 = vand.u32 %v1024, 4294901760
        %1774 = vmatpush.msra.mxu0 %v1773
        %v1775 = vand.u32 %v1023, 4294901760
        %1776 = vmatpush.msra.mxu0 %v1775
        %v1777 = vand.u32 %v1022, 4294901760
        %1778 = vmatpush.msra.mxu0 %v1777
        %v1779 = vand.u32 %v1021, 4294901760
        %1780 = vmatpush.msra.mxu0 %v1779
        %v1781 = vand.u32 %v1005, 4294901760
        %1782 = vmatmul.f32.gmra.mxu0 %v1781
        %v1783 = vpop.f32.mrf.mxu0
        %v1784 = vadd.f32 %v1687, %v1783
        %v1785 = vand.u32 %v1006, 4294901760
        %1786 = vmatmul.f32.gmra.mxu0 %v1785
        %v1787 = vpop.f32.mrf.mxu0
        %v1788 = vadd.f32 %v1691, %v1787
        %v1789 = vand.u32 %v1007, 4294901760
        %1790 = vmatmul.f32.gmra.mxu0 %v1789
        %v1791 = vpop.f32.mrf.mxu0
        %v1792 = vadd.f32 %v1695, %v1791
        %v1793 = vand.u32 %v1008, 4294901760
        %1794 = vmatmul.f32.gmra.mxu0 %v1793
        %v1795 = vpop.f32.mrf.mxu0
        %v1796 = vadd.f32 %v1699, %v1795
        %v1797 = vand.u32 %v1009, 4294901760
        %1798 = vmatmul.f32.gmra.mxu0 %v1797
        %v1799 = vpop.f32.mrf.mxu0
        %v1800 = vadd.f32 %v1703, %v1799
        %v1801 = vand.u32 %v1010, 4294901760
        %1802 = vmatmul.f32.gmra.mxu0 %v1801
        %v1803 = vpop.f32.mrf.mxu0
        %v1804 = vadd.f32 %v1707, %v1803
        %v1805 = vand.u32 %v1011, 4294901760
        %1806 = vmatmul.f32.gmra.mxu0 %v1805
        %v1807 = vpop.f32.mrf.mxu0
        %v1808 = vadd.f32 %v1711, %v1807
        %v1809 = vand.u32 %v1012, 4294901760
        %1810 = vmatmul.f32.gmra.mxu0 %v1809
        %v1811 = vpop.f32.mrf.mxu0
        %v1812 = vadd.f32 %v1715, %v1811
        %v1813 = vand.u32 %v1013, 4294901760
        %1814 = vmatmul.f32.gmra.mxu0 %v1813
        %v1815 = vpop.f32.mrf.mxu0
        %v1816 = vadd.f32 %v1719, %v1815
        %v1817 = vand.u32 %v1014, 4294901760
        %1818 = vmatmul.f32.gmra.mxu0 %v1817
        %v1819 = vpop.f32.mrf.mxu0
        %v1820 = vadd.f32 %v1723, %v1819
        %v1821 = vand.u32 %v1015, 4294901760
        %1822 = vmatmul.f32.gmra.mxu0 %v1821
        %v1823 = vpop.f32.mrf.mxu0
        %v1824 = vadd.f32 %v1727, %v1823
        %v1825 = vand.u32 %v1016, 4294901760
        %1826 = vmatmul.f32.gmra.mxu0 %v1825
        %v1827 = vpop.f32.mrf.mxu0
        %v1828 = vadd.f32 %v1731, %v1827
        %v1829 = vand.u32 %v1017, 4294901760
        %1830 = vmatmul.f32.gmra.mxu0 %v1829
        %v1831 = vpop.f32.mrf.mxu0
        %v1832 = vadd.f32 %v1735, %v1831
        %v1833 = vand.u32 %v1018, 4294901760
        %1834 = vmatmul.f32.gmra.mxu0 %v1833
        %v1835 = vpop.f32.mrf.mxu0
        %v1836 = vadd.f32 %v1739, %v1835
        %v1837 = vand.u32 %v1019, 4294901760
        %1838 = vmatmul.f32.gmra.mxu0 %v1837
        %v1839 = vpop.f32.mrf.mxu0
        %v1840 = vadd.f32 %v1743, %v1839
        %v1841 = vand.u32 %v1020, 4294901760
        %1842 = vmatmul.f32.gmra.mxu0 %v1841
        %v1843 = vpop.f32.mrf.mxu0
        %v1844 = vadd.f32 %v1747, %v1843
        %1845 = vdwg.mxu0
        %v1846 = vmax.f32 %v1784, 0.0
        %v1847 = vmax.f32 %v1788, 0.0
        %v1848 = vmax.f32 %v1792, 0.0
        %v1849 = vmax.f32 %v1796, 0.0
        %v1850 = vmax.f32 %v1800, 0.0
        %v1851 = vmax.f32 %v1804, 0.0
        %v1852 = vmax.f32 %v1808, 0.0
        %v1853 = vmax.f32 %v1812, 0.0
        %v1854 = vmax.f32 %v1816, 0.0
        %v1855 = vmax.f32 %v1820, 0.0
        %v1856 = vmax.f32 %v1824, 0.0
        %v1857 = vmax.f32 %v1828, 0.0
        %v1858 = vmax.f32 %v1832, 0.0
        %v1859 = vmax.f32 %v1836, 0.0
        %v1860 = vmax.f32 %v1840, 0.0
        %v1861 = vmax.f32 %v1844, 0.0
        %v1862 = vld [vmem:[%s5] sm:$0x1]
        %1864 = vset.pattern.permute.xlu0 0
        %1865 = vperm.xlu0 %1864, %v282
        %v1866 = vpop.permute.xlu0 %1865
        %v1868 = vperm.slane %v1866, 0
        %v1869 = vand.u32 %v1861, 4294901760
        %1870 = vmatpush.xpose.msra.mxu0 %v1869
        %v1871 = vand.u32 %v1860, 4294901760
        %1872 = vmatpush.xpose.msra.mxu0 %v1871
        %v1873 = vand.u32 %v1859, 4294901760
        %1874 = vmatpush.xpose.msra.mxu0 %v1873
        %v1875 = vand.u32 %v1858, 4294901760
        %1876 = vmatpush.xpose.msra.mxu0 %v1875
        %v1877 = vand.u32 %v1857, 4294901760
        %1878 = vmatpush.xpose.msra.mxu0 %v1877
        %v1879 = vand.u32 %v1856, 4294901760
        %1880 = vmatpush.xpose.msra.mxu0 %v1879
        %v1881 = vand.u32 %v1855, 4294901760
        %1882 = vmatpush.xpose.msra.mxu0 %v1881
        %v1883 = vand.u32 %v1854, 4294901760
        %1884 = vmatpush.xpose.msra.mxu0 %v1883
        %v1885 = vand.u32 %v1853, 4294901760
        %1886 = vmatpush.xpose.msra.mxu0 %v1885
        %v1887 = vand.u32 %v1852, 4294901760
        %1888 = vmatpush.xpose.msra.mxu0 %v1887
        %v1889 = vand.u32 %v1851, 4294901760
        %1890 = vmatpush.xpose.msra.mxu0 %v1889
        %v1891 = vand.u32 %v1850, 4294901760
        %1892 = vmatpush.xpose.msra.mxu0 %v1891
        %v1893 = vand.u32 %v1849, 4294901760
        %1894 = vmatpush.xpose.msra.mxu0 %v1893
        %v1895 = vand.u32 %v1848, 4294901760
        %1896 = vmatpush.xpose.msra.mxu0 %v1895
        %v1897 = vand.u32 %v1847, 4294901760
        %1898 = vmatpush.xpose.msra.mxu0 %v1897
        %v1899 = vand.u32 %v1846, 4294901760
        %1900 = vmatpush.xpose.msra.mxu0 %v1899
        %v1901 = vand.u32 %v1862, 4294901760
        %v1902 = vsub.f32 %v1862, %v1901
        %v1903 = vand.u32 %v1902, 4294901760
        %v1904 = vsub.f32 %v1902, %v1903
        %v1905 = vand.u32 %v1904, 4294901760
        %1906 = vmatmul.f32.gmra.mxu0 %v1905
        %v1907 = vpop.f32.mrf.mxu0
        %v1908 = vadd.f32 %v1868, %v1907
        %1909 = vdwg.mxu0
        %v1910 = vand.u32 %v1861, 4294901760
        %v1911 = vsub.f32 %v1861, %v1910
        %v1912 = vand.u32 %v1911, 4294901760
        %v1913 = vsub.f32 %v1911, %v1912
        %v1914 = vand.u32 %v1913, 4294901760
        %1915 = vmatpush.xpose.msra.mxu0 %v1914
        %v1916 = vand.u32 %v1860, 4294901760
        %v1917 = vsub.f32 %v1860, %v1916
        %v1918 = vand.u32 %v1917, 4294901760
        %v1919 = vsub.f32 %v1917, %v1918
        %v1920 = vand.u32 %v1919, 4294901760
        %1921 = vmatpush.xpose.msra.mxu0 %v1920
        %v1922 = vand.u32 %v1859, 4294901760
        %v1923 = vsub.f32 %v1859, %v1922
        %v1924 = vand.u32 %v1923, 4294901760
        %v1925 = vsub.f32 %v1923, %v1924
        %v1926 = vand.u32 %v1925, 4294901760
        %1927 = vmatpush.xpose.msra.mxu0 %v1926
        %v1928 = vand.u32 %v1858, 4294901760
        %v1929 = vsub.f32 %v1858, %v1928
        %v1930 = vand.u32 %v1929, 4294901760
        %v1931 = vsub.f32 %v1929, %v1930
        %v1932 = vand.u32 %v1931, 4294901760
        %1933 = vmatpush.xpose.msra.mxu0 %v1932
        %v1934 = vand.u32 %v1857, 4294901760
        %v1935 = vsub.f32 %v1857, %v1934
        %v1936 = vand.u32 %v1935, 4294901760
        %v1937 = vsub.f32 %v1935, %v1936
        %v1938 = vand.u32 %v1937, 4294901760
        %1939 = vmatpush.xpose.msra.mxu0 %v1938
        %v1940 = vand.u32 %v1856, 4294901760
        %v1941 = vsub.f32 %v1856, %v1940
        %v1942 = vand.u32 %v1941, 4294901760
        %v1943 = vsub.f32 %v1941, %v1942
        %v1944 = vand.u32 %v1943, 4294901760
        %1945 = vmatpush.xpose.msra.mxu0 %v1944
        %v1946 = vand.u32 %v1855, 4294901760
        %v1947 = vsub.f32 %v1855, %v1946
        %v1948 = vand.u32 %v1947, 4294901760
        %v1949 = vsub.f32 %v1947, %v1948
        %v1950 = vand.u32 %v1949, 4294901760
        %1951 = vmatpush.xpose.msra.mxu0 %v1950
        %v1952 = vand.u32 %v1854, 4294901760
        %v1953 = vsub.f32 %v1854, %v1952
        %v1954 = vand.u32 %v1953, 4294901760
        %v1955 = vsub.f32 %v1953, %v1954
        %v1956 = vand.u32 %v1955, 4294901760
        %1957 = vmatpush.xpose.msra.mxu0 %v1956
        %v1958 = vand.u32 %v1853, 4294901760
        %v1959 = vsub.f32 %v1853, %v1958
        %v1960 = vand.u32 %v1959, 4294901760
        %v1961 = vsub.f32 %v1959, %v1960
        %v1962 = vand.u32 %v1961, 4294901760
        %1963 = vmatpush.xpose.msra.mxu0 %v1962
        %v1964 = vand.u32 %v1852, 4294901760
        %v1965 = vsub.f32 %v1852, %v1964
        %v1966 = vand.u32 %v1965, 4294901760
        %v1967 = vsub.f32 %v1965, %v1966
        %v1968 = vand.u32 %v1967, 4294901760
        %1969 = vmatpush.xpose.msra.mxu0 %v1968
        %v1970 = vand.u32 %v1851, 4294901760
        %v1971 = vsub.f32 %v1851, %v1970
        %v1972 = vand.u32 %v1971, 4294901760
        %v1973 = vsub.f32 %v1971, %v1972
        %v1974 = vand.u32 %v1973, 4294901760
        %1975 = vmatpush.xpose.msra.mxu0 %v1974
        %v1976 = vand.u32 %v1850, 4294901760
        %v1977 = vsub.f32 %v1850, %v1976
        %v1978 = vand.u32 %v1977, 4294901760
        %v1979 = vsub.f32 %v1977, %v1978
        %v1980 = vand.u32 %v1979, 4294901760
        %1981 = vmatpush.xpose.msra.mxu0 %v1980
        %v1982 = vand.u32 %v1849, 4294901760
        %v1983 = vsub.f32 %v1849, %v1982
        %v1984 = vand.u32 %v1983, 4294901760
        %v1985 = vsub.f32 %v1983, %v1984
        %v1986 = vand.u32 %v1985, 4294901760
        %1987 = vmatpush.xpose.msra.mxu0 %v1986
        %v1988 = vand.u32 %v1848, 4294901760
        %v1989 = vsub.f32 %v1848, %v1988
        %v1990 = vand.u32 %v1989, 4294901760
        %v1991 = vsub.f32 %v1989, %v1990
        %v1992 = vand.u32 %v1991, 4294901760
        %1993 = vmatpush.xpose.msra.mxu0 %v1992
        %v1994 = vand.u32 %v1847, 4294901760
        %v1995 = vsub.f32 %v1847, %v1994
        %v1996 = vand.u32 %v1995, 4294901760
        %v1997 = vsub.f32 %v1995, %v1996
        %v1998 = vand.u32 %v1997, 4294901760
        %1999 = vmatpush.xpose.msra.mxu0 %v1998
        %v2000 = vand.u32 %v1846, 4294901760
        %v2001 = vsub.f32 %v1846, %v2000
        %v2002 = vand.u32 %v2001, 4294901760
        %v2003 = vsub.f32 %v2001, %v2002
        %v2004 = vand.u32 %v2003, 4294901760
        %2005 = vmatpush.xpose.msra.mxu0 %v2004
        %v2006 = vand.u32 %v1862, 4294901760
        %2007 = vmatmul.f32.gmra.mxu0 %v2006
        %v2008 = vpop.f32.mrf.mxu0
        %v2009 = vadd.f32 %v1908, %v2008
        %2010 = vdwg.mxu0
        %v2011 = vand.u32 %v1861, 4294901760
        %v2012 = vsub.f32 %v1861, %v2011
        %2013 = vmatpush.xpose.msra.mxu0 %v2012
        %v2014 = vand.u32 %v1860, 4294901760
        %v2015 = vsub.f32 %v1860, %v2014
        %2016 = vmatpush.xpose.msra.mxu0 %v2015
        %v2017 = vand.u32 %v1859, 4294901760
        %v2018 = vsub.f32 %v1859, %v2017
        %2019 = vmatpush.xpose.msra.mxu0 %v2018
        %v2020 = vand.u32 %v1858, 4294901760
        %v2021 = vsub.f32 %v1858, %v2020
        %2022 = vmatpush.xpose.msra.mxu0 %v2021
        %v2023 = vand.u32 %v1857, 4294901760
        %v2024 = vsub.f32 %v1857, %v2023
        %2025 = vmatpush.xpose.msra.mxu0 %v2024
        %v2026 = vand.u32 %v1856, 4294901760
        %v2027 = vsub.f32 %v1856, %v2026
        %2028 = vmatpush.xpose.msra.mxu0 %v2027
        %v2029 = vand.u32 %v1855, 4294901760
        %v2030 = vsub.f32 %v1855, %v2029
        %2031 = vmatpush.xpose.msra.mxu0 %v2030
        %v2032 = vand.u32 %v1854, 4294901760
        %v2033 = vsub.f32 %v1854, %v2032
        %2034 = vmatpush.xpose.msra.mxu0 %v2033
        %v2035 = vand.u32 %v1853, 4294901760
        %v2036 = vsub.f32 %v1853, %v2035
        %2037 = vmatpush.xpose.msra.mxu0 %v2036
        %v2038 = vand.u32 %v1852, 4294901760
        %v2039 = vsub.f32 %v1852, %v2038
        %2040 = vmatpush.xpose.msra.mxu0 %v2039
        %v2041 = vand.u32 %v1851, 4294901760
        %v2042 = vsub.f32 %v1851, %v2041
        %2043 = vmatpush.xpose.msra.mxu0 %v2042
        %v2044 = vand.u32 %v1850, 4294901760
        %v2045 = vsub.f32 %v1850, %v2044
        %2046 = vmatpush.xpose.msra.mxu0 %v2045
        %v2047 = vand.u32 %v1849, 4294901760
        %v2048 = vsub.f32 %v1849, %v2047
        %2049 = vmatpush.xpose.msra.mxu0 %v2048
        %v2050 = vand.u32 %v1848, 4294901760
        %v2051 = vsub.f32 %v1848, %v2050
        %2052 = vmatpush.xpose.msra.mxu0 %v2051
        %v2053 = vand.u32 %v1847, 4294901760
        %v2054 = vsub.f32 %v1847, %v2053
        %2055 = vmatpush.xpose.msra.mxu0 %v2054
        %v2056 = vand.u32 %v1846, 4294901760
        %v2057 = vsub.f32 %v1846, %v2056
        %2058 = vmatpush.xpose.msra.mxu0 %v2057
        %v2059 = vand.u32 %v1862, 4294901760
        %v2060 = vsub.f32 %v1862, %v2059
        %2061 = vmatmul.f32.gmra.mxu0 %v2060
        %v2062 = vpop.f32.mrf.mxu0
        %v2063 = vadd.f32 %v2009, %v2062
        %2064 = vdwg.mxu0
        %v2065 = vand.u32 %v1861, 4294901760
        %2066 = vmatpush.xpose.msra.mxu0 %v2065
        %v2067 = vand.u32 %v1860, 4294901760
        %2068 = vmatpush.xpose.msra.mxu0 %v2067
        %v2069 = vand.u32 %v1859, 4294901760
        %2070 = vmatpush.xpose.msra.mxu0 %v2069
        %v2071 = vand.u32 %v1858, 4294901760
        %2072 = vmatpush.xpose.msra.mxu0 %v2071
        %v2073 = vand.u32 %v1857, 4294901760
        %2074 = vmatpush.xpose.msra.mxu0 %v2073
        %v2075 = vand.u32 %v1856, 4294901760
        %2076 = vmatpush.xpose.msra.mxu0 %v2075
        %v2077 = vand.u32 %v1855, 4294901760
        %2078 = vmatpush.xpose.msra.mxu0 %v2077
        %v2079 = vand.u32 %v1854, 4294901760
        %2080 = vmatpush.xpose.msra.mxu0 %v2079
        %v2081 = vand.u32 %v1853, 4294901760
        %2082 = vmatpush.xpose.msra.mxu0 %v2081
        %v2083 = vand.u32 %v1852, 4294901760
        %2084 = vmatpush.xpose.msra.mxu0 %v2083
        %v2085 = vand.u32 %v1851, 4294901760
        %2086 = vmatpush.xpose.msra.mxu0 %v2085
        %v2087 = vand.u32 %v1850, 4294901760
        %2088 = vmatpush.xpose.msra.mxu0 %v2087
        %v2089 = vand.u32 %v1849, 4294901760
        %2090 = vmatpush.xpose.msra.mxu0 %v2089
        %v2091 = vand.u32 %v1848, 4294901760
        %2092 = vmatpush.xpose.msra.mxu0 %v2091
        %v2093 = vand.u32 %v1847, 4294901760
        %2094 = vmatpush.xpose.msra.mxu0 %v2093
        %v2095 = vand.u32 %v1846, 4294901760
        %2096 = vmatpush.xpose.msra.mxu0 %v2095
        %v2097 = vand.u32 %v1862, 4294901760
        %v2098 = vsub.f32 %v1862, %v2097
        %v2099 = vand.u32 %v2098, 4294901760
        %2100 = vmatmul.f32.gmra.mxu0 %v2099
        %v2101 = vpop.f32.mrf.mxu0
        %v2102 = vadd.f32 %v2063, %v2101
        %2103 = vdwg.mxu0
        %v2104 = vand.u32 %v1861, 4294901760
        %v2105 = vsub.f32 %v1861, %v2104
        %v2106 = vand.u32 %v2105, 4294901760
        %2107 = vmatpush.xpose.msra.mxu0 %v2106
        %v2108 = vand.u32 %v1860, 4294901760
        %v2109 = vsub.f32 %v1860, %v2108
        %v2110 = vand.u32 %v2109, 4294901760
        %2111 = vmatpush.xpose.msra.mxu0 %v2110
        %v2112 = vand.u32 %v1859, 4294901760
        %v2113 = vsub.f32 %v1859, %v2112
        %v2114 = vand.u32 %v2113, 4294901760
        %2115 = vmatpush.xpose.msra.mxu0 %v2114
        %v2116 = vand.u32 %v1858, 4294901760
        %v2117 = vsub.f32 %v1858, %v2116
        %v2118 = vand.u32 %v2117, 4294901760
        %2119 = vmatpush.xpose.msra.mxu0 %v2118
        %v2120 = vand.u32 %v1857, 4294901760
        %v2121 = vsub.f32 %v1857, %v2120
        %v2122 = vand.u32 %v2121, 4294901760
        %2123 = vmatpush.xpose.msra.mxu0 %v2122
        %v2124 = vand.u32 %v1856, 4294901760
        %v2125 = vsub.f32 %v1856, %v2124
        %v2126 = vand.u32 %v2125, 4294901760
        %2127 = vmatpush.xpose.msra.mxu0 %v2126
        %v2128 = vand.u32 %v1855, 4294901760
        %v2129 = vsub.f32 %v1855, %v2128
        %v2130 = vand.u32 %v2129, 4294901760
        %2131 = vmatpush.xpose.msra.mxu0 %v2130
        %v2132 = vand.u32 %v1854, 4294901760
        %v2133 = vsub.f32 %v1854, %v2132
        %v2134 = vand.u32 %v2133, 4294901760
        %2135 = vmatpush.xpose.msra.mxu0 %v2134
        %v2136 = vand.u32 %v1853, 4294901760
        %v2137 = vsub.f32 %v1853, %v2136
        %v2138 = vand.u32 %v2137, 4294901760
        %2139 = vmatpush.xpose.msra.mxu0 %v2138
        %v2140 = vand.u32 %v1852, 4294901760
        %v2141 = vsub.f32 %v1852, %v2140
        %v2142 = vand.u32 %v2141, 4294901760
        %2143 = vmatpush.xpose.msra.mxu0 %v2142
        %v2144 = vand.u32 %v1851, 4294901760
        %v2145 = vsub.f32 %v1851, %v2144
        %v2146 = vand.u32 %v2145, 4294901760
        %2147 = vmatpush.xpose.msra.mxu0 %v2146
        %v2148 = vand.u32 %v1850, 4294901760
        %v2149 = vsub.f32 %v1850, %v2148
        %v2150 = vand.u32 %v2149, 4294901760
        %2151 = vmatpush.xpose.msra.mxu0 %v2150
        %v2152 = vand.u32 %v1849, 4294901760
        %v2153 = vsub.f32 %v1849, %v2152
        %v2154 = vand.u32 %v2153, 4294901760
        %2155 = vmatpush.xpose.msra.mxu0 %v2154
        %v2156 = vand.u32 %v1848, 4294901760
        %v2157 = vsub.f32 %v1848, %v2156
        %v2158 = vand.u32 %v2157, 4294901760
        %2159 = vmatpush.xpose.msra.mxu0 %v2158
        %v2160 = vand.u32 %v1847, 4294901760
        %v2161 = vsub.f32 %v1847, %v2160
        %v2162 = vand.u32 %v2161, 4294901760
        %2163 = vmatpush.xpose.msra.mxu0 %v2162
        %v2164 = vand.u32 %v1846, 4294901760
        %v2165 = vsub.f32 %v1846, %v2164
        %v2166 = vand.u32 %v2165, 4294901760
        %2167 = vmatpush.xpose.msra.mxu0 %v2166
        %v2168 = vand.u32 %v1862, 4294901760
        %2169 = vmatmul.f32.gmra.mxu0 %v2168
        %v2170 = vpop.f32.mrf.mxu0
        %v2171 = vadd.f32 %v2102, %v2170
        %2172 = vdwg.mxu0
        %v2173 = vand.u32 %v1861, 4294901760
        %2174 = vmatpush.xpose.msra.mxu0 %v2173
        %v2175 = vand.u32 %v1860, 4294901760
        %2176 = vmatpush.xpose.msra.mxu0 %v2175
        %v2177 = vand.u32 %v1859, 4294901760
        %2178 = vmatpush.xpose.msra.mxu0 %v2177
        %v2179 = vand.u32 %v1858, 4294901760
        %2180 = vmatpush.xpose.msra.mxu0 %v2179
        %v2181 = vand.u32 %v1857, 4294901760
        %2182 = vmatpush.xpose.msra.mxu0 %v2181
        %v2183 = vand.u32 %v1856, 4294901760
        %2184 = vmatpush.xpose.msra.mxu0 %v2183
        %v2185 = vand.u32 %v1855, 4294901760
        %2186 = vmatpush.xpose.msra.mxu0 %v2185
        %v2187 = vand.u32 %v1854, 4294901760
        %2188 = vmatpush.xpose.msra.mxu0 %v2187
        %v2189 = vand.u32 %v1853, 4294901760
        %2190 = vmatpush.xpose.msra.mxu0 %v2189
        %v2191 = vand.u32 %v1852, 4294901760
        %2192 = vmatpush.xpose.msra.mxu0 %v2191
        %v2193 = vand.u32 %v1851, 4294901760
        %2194 = vmatpush.xpose.msra.mxu0 %v2193
        %v2195 = vand.u32 %v1850, 4294901760
        %2196 = vmatpush.xpose.msra.mxu0 %v2195
        %v2197 = vand.u32 %v1849, 4294901760
        %2198 = vmatpush.xpose.msra.mxu0 %v2197
        %v2199 = vand.u32 %v1848, 4294901760
        %2200 = vmatpush.xpose.msra.mxu0 %v2199
        %v2201 = vand.u32 %v1847, 4294901760
        %2202 = vmatpush.xpose.msra.mxu0 %v2201
        %v2203 = vand.u32 %v1846, 4294901760
        %2204 = vmatpush.xpose.msra.mxu0 %v2203
        %v2205 = vand.u32 %v1862, 4294901760
        %2206 = vmatmul.f32.gmra.mxu0 %v2205
        %v2207 = vpop.f32.mrf.mxu0
        %v2208 = vadd.f32 %v2171, %v2207
        %2209 = vdwg.mxu0
        %2210 = vst [vmem:[%s273] sm:$0x1] %v2208
        %s2211 = sand.u32 %s183, 1
        %s2212 = scalar_lea.sflag [#allocation4], %s2211
        %s2213 = sand.u32 %s183, 1
        %s2214 = scalar_lea.vmem [#allocation3], %s2213
        // Predicated region
        $region49: #{feedforward_critic.1} parent=47 // pred_check
          %p2215 = pneg %p193
        $region50: #{feedforward_critic.1} parent=47 // pred_check_branch
          %2217 = sbr.rel (%p2215) target = $region52
        $region51: #{feedforward_critic.1} parent=47 // pred_region
          %2219 = vsyncadd %s2212, 0
          %s2220 = scalar_lea.hbm %s7, %s23
          %s2222 = sshll.u32 %s2214, 4
          %s2223 = int_to_ptr.vmem [resolvable:$true] %s2222
          %s2224 = sshll.u32 %s2220, 4
          %s2225 = int_to_ptr.hbm [resolvable:$true] %s2224
          %2227 = dma.vmem_to_hbm [thread:$0]  %s2223, 16, %s2225, %s2212
        $region52: #{feedforward_critic.1} parent=47 // pred_fallthru
          _
      $region48: #{feedforward_critic.1} parent=5 // pred_fallthru
        _
      %p2228 = scmp.le.s32.totalorder 2, %s18
      // Predicated region
      $region53: #{feedforward_critic.1} parent=5 // pred_check
        %p2229 = pneg %p2228
      $region54: #{feedforward_critic.1} parent=5 // pred_check_branch
        %2231 = sbr.rel (%p2229) target = $region56
      $region55: #{feedforward_critic.1} parent=5 // pred_region
        %s2232 = ssub.s32 %s18, 2
        // Predicated region
        $region57: #{feedforward_critic.1} parent=55 // pred_check
          %p2233 = pneg %p199
        $region58: #{feedforward_critic.1} parent=55 // pred_check_branch
          %2235 = sbr.rel (%p2233) target = $region60
        $region59: #{feedforward_critic.1} parent=55 // pred_region
          %s2236 = sand.u32 %s184, 1
          %s2237 = scalar_lea.sflag [#allocation4], %s2236
          %s2238 = sand.u32 %s184, 1
          %s2239 = scalar_lea.vmem [#allocation3], %s2238
          %2241 = dma.done %s2237, 16
        $region60: #{feedforward_critic.1} parent=55 // pred_fallthru
          _
      $region56: #{feedforward_critic.1} parent=5 // pred_fallthru
        _
    $region6: #{feedforward_critic.1} parent=1 // loop_footer
      %s22 = sadd.s32 1, %s18
    $region7: #{feedforward_critic.1} parent=1 // loop_footer_branch
      %17 = sbr.rel target = $region3
    $region8: #{feedforward_critic.1} parent=1 // loop_exit
      _
    %2242 = vsyncpa [#allocation4], 1
    %s2243 = scalar_lea.sflag [#allocation4], 1
    %2244 = vsyncpa %s2243, 1

</llo_original>
